<compile_context>
chip_gen: v7x
topology: tpu7x:2x2x1
jax: 0.10.0
libtpu: 0.0.40
codegen_flags: <defaults>
</compile_context>

<pallas_src>
import functools

import jax
import jax.numpy as jnp
from jax import lax
from jax.experimental import pallas as pl
from jax.experimental.pallas import tpu as pltpu


# ----------------------------------------------------------------------------
# Tiling / VMEM helpers
# ----------------------------------------------------------------------------
def _round_up(n, m):
    return ((n + m - 1) // m) * m


def _lane_pad(c):
    return _round_up(max(int(c), 1), 128)


_VMEM_LIMIT = []


def _vmem_limit_bytes():
    """Generation-aware scoped-VMEM limit (~96 MiB on v5e/v6e, ~48 MiB on v7x)."""
    if not _VMEM_LIMIT:
        try:
            cap = int(pltpu.get_tpu_info().vmem_capacity_bytes)
        except Exception:
            cap = 64 * 1024 * 1024
        _VMEM_LIMIT.append(int(min(max(cap * 3 // 4, 32 * 1024 * 1024),
                                   100 * 1024 * 1024)))
    return _VMEM_LIMIT[0]


def _conv_tile_bytes(th, wp, cin, cout_blk):
    """VMEM footprint for one conv grid step: double-buffered streamed blocks,
    lane padding (Cin=3 pads to 128 lanes), fp32 accumulator, scratch."""
    cin_p, cout_p = _lane_pad(cin), _lane_pad(cout_blk)
    rows = th * wp
    x_main = 2 * rows * cin_p * 2            # bf16, double-buffered
    halos = 2 * 2 * wp * cin_p * 2
    wgt = 2 * 9 * max(cin, 8) * cout_p * 2
    out = 2 * rows * cout_p * 2              # bf16 output, double-buffered
    scratch = (rows + 2 * wp + 8) * cin_p * 2
    acc = rows * cout_p * 4                  # fp32 accumulator temp
    return x_main + halos + wgt + out + scratch + acc + (2 << 20)


def _pick_th(n, h, wp, cin, cout_blk, max_th=None):
    """Largest row tile (divisor of H) fitting the VMEM budget; for N==1 prefer
    >=2 row tiles so megacore / pipelining stay busy."""
    budget = int(_vmem_limit_bytes() * 0.85)
    divs = [d for d in range(h, 0, -1)
            if h % d == 0 and (max_th is None or d <= max_th)]
    fit = [d for d in divs if _conv_tile_bytes(d, wp, cin, cout_blk) <= budget]
    if not fit:
        return divs[-1]
    if n >= 2:
        return fit[0]
    multi = [d for d in fit if h // d >= 2]
    return multi[0] if multi else fit[0]


# ----------------------------------------------------------------------------
# Pallas kernels
# ----------------------------------------------------------------------------
def _conv3x3_kernel(xm_ref, xh0_ref, xh1_ref, w_ref, b_ref, o_ref, xw_ref,
                    *, wp, th):
    """3x3 'same' conv + bias + ReLU on a width-padded, flattened pixel grid.

    xm_ref  : (1, th*Wp, Cin)  bf16  tile body (th padded-width image rows)
    xh*_ref : (1, Wp, Cin)     bf16  2-row dy halo directly below the body
    w_ref   : (3, 3, Cin, Cb)  bf16  weights (HWIO), resident per Cout block
    b_ref   : (1, Cb)          f32
    o_ref   : (1, th*Wp, Cb)   bf16  full dense tile store
    xw_ref  : ((th+2)*Wp + 8, Cin) bf16 VMEM scratch (body + halo + zero tail)
    """
    m = th * wp
    cin = xw_ref.shape[-1]

    # Assemble the haloed tile in VMEM (all offsets/sizes are multiples of 8).
    xw_ref[pl.ds(0, m), :] = xm_ref[0]
    xw_ref[pl.ds(m, wp), :] = xh0_ref[0]
    xw_ref[pl.ds(m + wp, wp), :] = xh1_ref[0]
    # Defined zeros for the <=2 overhanging taps of the last (junk) rows, so
    # every output row of the tile is written from initialized data.
    xw_ref[pl.ds(m + 2 * wp, 8), :] = jnp.zeros((8, cin), xw_ref.dtype)

    cout = o_ref.shape[-1]
    acc = jnp.zeros((m, cout), jnp.float32)
    for dy in range(3):
        for dx in range(3):
            lhs = xw_ref[pl.ds(dy * wp + dx, m), :]          # (m, Cin) bf16
            acc = acc + jnp.dot(lhs, w_ref[dy, dx],
                                preferred_element_type=jnp.float32)
    acc = jnp.maximum(acc + b_ref[...], 0.0)                 # bias + ReLU in f32
    o_ref[0] = acc.astype(o_ref.dtype)                       # dense bf16 store


def _maxpool_kernel(x_ref, o_ref, *, c):
    # x_ref: (tp, 2, Wo, 2*C) -- H-pair on a leading dim, W-pair on lanes.
    x = x_ref[...]
    h = jnp.maximum(x[:, 0], x[:, 1])                        # (tp, Wo, 2*C)
    o_ref[...] = jnp.maximum(h[..., :c], h[..., c:])         # (tp, Wo, C)


# ----------------------------------------------------------------------------
# Wrappers (glue: one pad + metadata-only reshapes)
# ----------------------------------------------------------------------------
def conv3x3_relu(x, w, b, *, max_th=None):
    """x: (N,H,W,Cin); w: (3,3,Cin,Cout) HWIO; b: (Cout,). 'same' conv + ReLU.

    Returns bf16 (N,H,W,Cout).  bf16 MXU matmuls with f32 accumulation."""
    N, H, W, Cin = x.shape
    Cout = w.shape[-1]
    Wp = _round_up(W + 2, 8)            # width-padded pixel rows (>= W+2)
    assert Wp >= W + 2                  # junk-column invariant (dx wrap is junk)

    xb = x.astype(jnp.bfloat16)
    xp = jnp.pad(xb, ((0, 0), (1, 1), (1, Wp - W - 1), (0, 0)))  # (N,H+2,Wp,Cin)
    xg = xp.reshape(N, (H + 2) * Wp, Cin)                        # free reshape

    # Split Cout for the deep layers: >=2 grid steps (megacore / DMA overlap)
    # and half the resident weight block (4.5 MiB -> 2.25 MiB for 512x512).
    cb = 2 if (Cout >= 512 and Cout % 256 == 0) else 1
    cblk = Cout // cb

    th = _pick_th(N, H, Wp, Cin, cblk, max_th=max_th)
    T = H // th
    M = th * Wp

    wb = w.astype(jnp.bfloat16)
    b2 = b.reshape(1, Cout).astype(jnp.float32)

    cost = pl.CostEstimate(
        flops=int(2 * 9 * N * H * W * Cin * Cout),
        transcendentals=0,
        bytes_accessed=int(xg.size * 2 + wb.size * 2 + N * H * Wp * Cout * 2),
    )

    out = pl.pallas_call(
        functools.partial(_conv3x3_kernel, wp=Wp, th=th),
        out_shape=jax.ShapeDtypeStruct((N, H * Wp, Cout), jnp.bfloat16),
        grid=(cb, N, T),
        in_specs=[
            # tile body + 2-row halo: three views of the SAME padded array
            pl.BlockSpec((1, M, Cin), lambda c, n, t: (n, t, 0)),
            pl.BlockSpec((1, Wp, Cin), lambda c, n, t: (n, (t + 1) * th, 0)),
            pl.BlockSpec((1, Wp, Cin), lambda c, n, t: (n, (t + 1) * th + 1, 0)),
            pl.BlockSpec((3, 3, Cin, cblk), lambda c, n, t: (0, 0, 0, c)),
            pl.BlockSpec((1, cblk), lambda c, n, t: (0, c)),
        ],
        out_specs=pl.BlockSpec((1, M, cblk), lambda c, n, t: (n, t, c)),
        scratch_shapes=[pltpu.VMEM(((th + 2) * Wp + 8, Cin), jnp.bfloat16)],
        compiler_params=pltpu.CompilerParams(
            dimension_semantics=("parallel", "parallel", "parallel"),
            vmem_limit_bytes=_vmem_limit_bytes()),
        cost_estimate=cost,
    )(xg, xg, xg, wb, b2)

    # Drop the junk width columns (their taps wrap across padded rows).
    return out.reshape(N, H, Wp, Cout)[:, :, :W, :]


def maxpool2x2(x):
    """2x2/2 max pool, NHWC -> NHWC (matches nn.MaxPool2d(2, 2))."""
    N, H, W, C = x.shape
    assert H % 2 == 0 and W % 2 == 0
    Ho, Wo = H // 2, W // 2
    R = N * Ho
    xr = x.reshape(R, 2, Wo, 2 * C)                 # free (metadata-only) reshape

    itemsize = x.dtype.itemsize
    per_row = (2 * 2 * Wo * _round_up(2 * C, 128)
               + 2 * Wo * _lane_pad(C)) * itemsize
    target = max(1, (8 * 1024 * 1024) // per_row)
    target = min(target, max(1, R // 2))            # keep >=2 grid steps
    tp = max([d for d in range(1, R + 1) if R % d == 0 and d <= target] or [1])

    out = pl.pallas_call(
        functools.partial(_maxpool_kernel, c=C),
        out_shape=jax.ShapeDtypeStruct((R, Wo, C), x.dtype),
        grid=(R // tp,),
        in_specs=[pl.BlockSpec((tp, 2, Wo, 2 * C), lambda t: (t, 0, 0, 0))],
        out_specs=pl.BlockSpec((tp, Wo, C), lambda t: (t, 0, 0)),
        compiler_params=pltpu.CompilerParams(
            dimension_semantics=("parallel",),
            vmem_limit_bytes=_vmem_limit_bytes()),
    )(xr)
    return out.reshape(N, Ho, Wo, C)


# ----------------------------------------------------------------------------
# VGG16_features model definition (synthetic deterministic weights)
# ----------------------------------------------------------------------------
_PLAN = [
    ("conv", 3, 64), ("conv", 64, 64), ("pool",),
    ("conv", 64, 128), ("conv", 128, 128),
    ("pool",), ("conv", 128, 256), ("conv", 256, 256), ("conv", 256, 256),
    ("pool",), ("conv", 256, 512), ("conv", 512, 512), ("conv", 512, 512),
    ("pool",), ("conv", 512, 512), ("conv", 512, 512), ("conv", 512, 512),
]


def init_params(key):
    """Deterministic synthetic conv params, HWIO layout (3,3,Cin,Cout)."""
    params = []
    for op in _PLAN:
        if op[0] != "conv":
            continue
        cin, cout = op[1], op[2]
        key, kw, kb = jax.random.split(key, 3)
        std = (2.0 / (9 * cin)) ** 0.5
        w = std * jax.random.normal(kw, (3, 3, cin, cout), jnp.float32)
        b = 0.01 * jax.random.normal(kb, (cout,), jnp.float32)
        params.append((w, b))
    return params


def vgg16_features_forward(x_nchw, params):
    """Matches VGG16_features.forward: layer_1 -> layer_2 -> layer_3 -> layer_4."""
    x = jnp.transpose(x_nchw, (0, 2, 3, 1)).astype(jnp.bfloat16)  # NCHW -> NHWC
    i = 0
    for op in _PLAN:
        if op[0] == "pool":
            x = maxpool2x2(x)
        else:
            w, b = params[i]
            i += 1
            x = conv3x3_relu(x, w, b)
    # TODO(synk): the reference forward also calls self.layer_5, which is never
    # defined in __init__ (would raise AttributeError in PyTorch); omitted.
    return jnp.transpose(x, (0, 3, 1, 2)).astype(jnp.float32)     # back to NCHW


# ----------------------------------------------------------------------------
# Main: small correctness checks + full forward at a small shape
# ----------------------------------------------------------------------------
if __name__ == "__main__":
    key = jax.random.PRNGKey(0)
    kx, kp, k1, k2, k3, k4 = jax.random.split(key, 6)

    # -- unit check 1: conv vs XLA reference; forces multiple row tiles (halo
    #    index maps with t > 0) and the Cout-split (cb=2) path.
    xt = jax.random.normal(k1, (1, 16, 16, 64), jnp.float32)
    wt = 0.06 * jax.random.normal(k2, (3, 3, 64, 512), jnp.float32)
    bt = 0.01 * jax.random.normal(k3, (512,), jnp.float32)
    yt = conv3x3_relu(xt, wt, bt, max_th=4).astype(jnp.float32)
    xr = xt.astype(jnp.bfloat16).astype(jnp.float32)
    wr = wt.astype(jnp.bfloat16).astype(jnp.float32)
    yr = jnp.maximum(
        lax.conv_general_dilated(
            xr, wr, window_strides=(1, 1), padding="SAME",
            dimension_numbers=("NHWC", "HWIO", "NHWC"),
            precision=lax.Precision.HIGHEST) + bt, 0.0)
    assert yt.shape == yr.shape
    assert bool(jnp.allclose(yt, yr, atol=0.1, rtol=0.05)), \
        float(jnp.max(jnp.abs(yt - yr)))

    # -- unit check 2: maxpool vs reshape/max reference (exact in bf16).
    xq = jax.random.normal(k4, (2, 8, 8, 64), jnp.float32).astype(jnp.bfloat16)
    pq = maxpool2x2(xq)
    pr = jnp.max(xq.reshape(2, 4, 2, 4, 2, 64), axis=(2, 4))
    assert bool(jnp.array_equal(pq, pr))

    # -- full VGG16_features forward (layer_1..layer_4) at a small NCHW input.
    x = jax.random.normal(kx, (2, 3, 32, 32), jnp.float32)
    params = init_params(kp)

    y = jax.jit(vgg16_features_forward)(x, params)
    y = jax.block_until_ready(y)

    assert y.shape == (2, 512, 2, 2), y.shape        # 32 / 2^4 (4 pools)
    assert y.dtype == jnp.float32
    assert bool(jnp.all(jnp.isfinite(y)))
    print("KERNEL_OK")
</pallas_src>

<mosaic_0001>
module attributes {stable_mosaic.version = 11 : i64} {
  func.func @_conv3x3_kernel(%arg0: i32, %arg1: i32, %arg2: i32, %arg3: memref<1x96x64xbf16, #tpu.memory_space<vmem>>, %arg4: memref<1x24x64xbf16, #tpu.memory_space<vmem>>, %arg5: memref<1x24x64xbf16, #tpu.memory_space<vmem>>, %arg6: memref<3x3x64x256xbf16, #tpu.memory_space<vmem>>, %arg7: memref<1x256xf32, #tpu.memory_space<vmem>>, %arg8: memref<1x96x256xbf16, #tpu.memory_space<vmem>>, %arg9: memref<152x64xbf16, #tpu.memory_space<vmem>>) attributes {dimension_semantics = [#tpu.dimension_semantics<parallel>, #tpu.dimension_semantics<parallel>, #tpu.dimension_semantics<parallel>], iteration_bounds = array<i64: 2, 1, 4>, scalar_prefetch = 0 : i64, scratch_operands = 1 : i64, tpu.core_type = #tpu.core_type<tc>, window_params = [{transform_indices = @transform_0, window_bounds = array<i64: 1, 96, 64>}, {transform_indices = @transform_1, window_bounds = array<i64: 1, 24, 64>}, {transform_indices = @transform_2, window_bounds = array<i64: 1, 24, 64>}, {transform_indices = @transform_3, window_bounds = array<i64: 3, 3, 64, 256>}, {transform_indices = @transform_4, window_bounds = array<i64: 1, 256>}, {transform_indices = @transform_5, window_bounds = array<i64: 1, 96, 256>}]} {
    %c0 = arith.constant 0 : index
    %c0_0 = arith.constant 0 : index
    %c0_1 = arith.constant 0 : index
    %0 = vector.load %arg3[%c0, %c0_0, %c0_1] : memref<1x96x64xbf16, #tpu.memory_space<vmem>>, vector<1x96x64xbf16>
    %1 = vector.shape_cast %0 : vector<1x96x64xbf16> to vector<96x64xbf16>
    %c0_2 = arith.constant 0 : index
    %c0_3 = arith.constant 0 : index
    %2 = vector.load %arg9[%c0_2, %c0_3] : memref<152x64xbf16, #tpu.memory_space<vmem>>, vector<96x64xbf16>
    tpu.vector_store %arg9[%c0_2, %c0_3], %1 {strides = array<i32>} : memref<152x64xbf16, #tpu.memory_space<vmem>>, vector<96x64xbf16>,
    %c0_4 = arith.constant 0 : index
    %c0_5 = arith.constant 0 : index
    %c0_6 = arith.constant 0 : index
    %3 = vector.load %arg4[%c0_4, %c0_5, %c0_6] : memref<1x24x64xbf16, #tpu.memory_space<vmem>>, vector<1x24x64xbf16>
    %4 = vector.shape_cast %3 : vector<1x24x64xbf16> to vector<24x64xbf16>
    %c96 = arith.constant 96 : index
    %c0_7 = arith.constant 0 : index
    %5 = vector.load %arg9[%c96, %c0_7] : memref<152x64xbf16, #tpu.memory_space<vmem>>, vector<24x64xbf16>
    tpu.vector_store %arg9[%c96, %c0_7], %4 {strides = array<i32>} : memref<152x64xbf16, #tpu.memory_space<vmem>>, vector<24x64xbf16>,
    %c0_8 = arith.constant 0 : index
    %c0_9 = arith.constant 0 : index
    %c0_10 = arith.constant 0 : index
    %6 = vector.load %arg5[%c0_8, %c0_9, %c0_10] : memref<1x24x64xbf16, #tpu.memory_space<vmem>>, vector<1x24x64xbf16>
    %7 = vector.shape_cast %6 : vector<1x24x64xbf16> to vector<24x64xbf16>
    %c120 = arith.constant 120 : index
    %c0_11 = arith.constant 0 : index
    %8 = vector.load %arg9[%c120, %c0_11] : memref<152x64xbf16, #tpu.memory_space<vmem>>, vector<24x64xbf16>
    tpu.vector_store %arg9[%c120, %c0_11], %7 {strides = array<i32>} : memref<152x64xbf16, #tpu.memory_space<vmem>>, vector<24x64xbf16>,
    %cst = arith.constant 0.000000e+00 : bf16
    %9 = vector.broadcast %cst : bf16 to vector<8x64xbf16>
    %c144 = arith.constant 144 : index
    %c0_12 = arith.constant 0 : index
    %10 = vector.load %arg9[%c144, %c0_12] : memref<152x64xbf16, #tpu.memory_space<vmem>>, vector<8x64xbf16>
    tpu.vector_store %arg9[%c144, %c0_12], %9 {strides = array<i32>} : memref<152x64xbf16, #tpu.memory_space<vmem>>, vector<8x64xbf16>,
    %cst_13 = arith.constant 0.000000e+00 : f32
    %11 = vector.broadcast %cst_13 : f32 to vector<96x256xf32>
    %c0_14 = arith.constant 0 : index
    %c0_15 = arith.constant 0 : index
    %12 = vector.load %arg9[%c0_14, %c0_15] : memref<152x64xbf16, #tpu.memory_space<vmem>>, vector<96x64xbf16>
    %c0_16 = arith.constant 0 : index
    %c0_17 = arith.constant 0 : index
    %c0_18 = arith.constant 0 : index
    %c0_19 = arith.constant 0 : index
    %13 = vector.load %arg6[%c0_16, %c0_17, %c0_18, %c0_19] : memref<3x3x64x256xbf16, #tpu.memory_space<vmem>>, vector<1x1x64x256xbf16>
    %14 = vector.shape_cast %13 : vector<1x1x64x256xbf16> to vector<64x256xbf16>
    %cst_20 = arith.constant dense<0.000000e+00> : vector<96x256xf32>
    %15 = tpu.matmul %12, %14, %cst_20 {dimension_numbers = #tpu.dot_dimension_numbers<[1], [0], [0], [1], [0, 0, 1, 1], [], []>} : vector<96x64xbf16>, vector<64x256xbf16>, vector<96x256xf32> -> vector<96x256xf32>
    %16 = arith.addf %11, %15 : vector<96x256xf32>
    %c1 = arith.constant 1 : index
    %c0_21 = arith.constant 0 : index
    %17 = vector.load %arg9[%c1, %c0_21] : memref<152x64xbf16, #tpu.memory_space<vmem>>, vector<96x64xbf16>
    %c0_22 = arith.constant 0 : index
    %c1_23 = arith.constant 1 : index
    %c0_24 = arith.constant 0 : index
    %c0_25 = arith.constant 0 : index
    %18 = vector.load %arg6[%c0_22, %c1_23, %c0_24, %c0_25] : memref<3x3x64x256xbf16, #tpu.memory_space<vmem>>, vector<1x1x64x256xbf16>
    %19 = vector.shape_cast %18 : vector<1x1x64x256xbf16> to vector<64x256xbf16>
    %cst_26 = arith.constant dense<0.000000e+00> : vector<96x256xf32>
    %20 = tpu.matmul %17, %19, %cst_26 {dimension_numbers = #tpu.dot_dimension_numbers<[1], [0], [0], [1], [0, 0, 1, 1], [], []>} : vector<96x64xbf16>, vector<64x256xbf16>, vector<96x256xf32> -> vector<96x256xf32>
    %21 = arith.addf %16, %20 : vector<96x256xf32>
    %c2 = arith.constant 2 : index
    %c0_27 = arith.constant 0 : index
    %22 = vector.load %arg9[%c2, %c0_27] : memref<152x64xbf16, #tpu.memory_space<vmem>>, vector<96x64xbf16>
    %c0_28 = arith.constant 0 : index
    %c2_29 = arith.constant 2 : index
    %c0_30 = arith.constant 0 : index
    %c0_31 = arith.constant 0 : index
    %23 = vector.load %arg6[%c0_28, %c2_29, %c0_30, %c0_31] : memref<3x3x64x256xbf16, #tpu.memory_space<vmem>>, vector<1x1x64x256xbf16>
    %24 = vector.shape_cast %23 : vector<1x1x64x256xbf16> to vector<64x256xbf16>
    %cst_32 = arith.constant dense<0.000000e+00> : vector<96x256xf32>
    %25 = tpu.matmul %22, %24, %cst_32 {dimension_numbers = #tpu.dot_dimension_numbers<[1], [0], [0], [1], [0, 0, 1, 1], [], []>} : vector<96x64xbf16>, vector<64x256xbf16>, vector<96x256xf32> -> vector<96x256xf32>
    %26 = arith.addf %21, %25 : vector<96x256xf32>
    %c24 = arith.constant 24 : index
    %c0_33 = arith.constant 0 : index
    %27 = vector.load %arg9[%c24, %c0_33] : memref<152x64xbf16, #tpu.memory_space<vmem>>, vector<96x64xbf16>
    %c1_34 = arith.constant 1 : index
    %c0_35 = arith.constant 0 : index
    %c0_36 = arith.constant 0 : index
    %c0_37 = arith.constant 0 : index
    %28 = vector.load %arg6[%c1_34, %c0_35, %c0_36, %c0_37] : memref<3x3x64x256xbf16, #tpu.memory_space<vmem>>, vector<1x1x64x256xbf16>
    %29 = vector.shape_cast %28 : vector<1x1x64x256xbf16> to vector<64x256xbf16>
    %cst_38 = arith.constant dense<0.000000e+00> : vector<96x256xf32>
    %30 = tpu.matmul %27, %29, %cst_38 {dimension_numbers = #tpu.dot_dimension_numbers<[1], [0], [0], [1], [0, 0, 1, 1], [], []>} : vector<96x64xbf16>, vector<64x256xbf16>, vector<96x256xf32> -> vector<96x256xf32>
    %31 = arith.addf %26, %30 : vector<96x256xf32>
    %c25 = arith.constant 25 : index
    %c0_39 = arith.constant 0 : index
    %32 = vector.load %arg9[%c25, %c0_39] : memref<152x64xbf16, #tpu.memory_space<vmem>>, vector<96x64xbf16>
    %c1_40 = arith.constant 1 : index
    %c1_41 = arith.constant 1 : index
    %c0_42 = arith.constant 0 : index
    %c0_43 = arith.constant 0 : index
    %33 = vector.load %arg6[%c1_40, %c1_41, %c0_42, %c0_43] : memref<3x3x64x256xbf16, #tpu.memory_space<vmem>>, vector<1x1x64x256xbf16>
    %34 = vector.shape_cast %33 : vector<1x1x64x256xbf16> to vector<64x256xbf16>
    %cst_44 = arith.constant dense<0.000000e+00> : vector<96x256xf32>
    %35 = tpu.matmul %32, %34, %cst_44 {dimension_numbers = #tpu.dot_dimension_numbers<[1], [0], [0], [1], [0, 0, 1, 1], [], []>} : vector<96x64xbf16>, vector<64x256xbf16>, vector<96x256xf32> -> vector<96x256xf32>
    %36 = arith.addf %31, %35 : vector<96x256xf32>
    %c26 = arith.constant 26 : index
    %c0_45 = arith.constant 0 : index
    %37 = vector.load %arg9[%c26, %c0_45] : memref<152x64xbf16, #tpu.memory_space<vmem>>, vector<96x64xbf16>
    %c1_46 = arith.constant 1 : index
    %c2_47 = arith.constant 2 : index
    %c0_48 = arith.constant 0 : index
    %c0_49 = arith.constant 0 : index
    %38 = vector.load %arg6[%c1_46, %c2_47, %c0_48, %c0_49] : memref<3x3x64x256xbf16, #tpu.memory_space<vmem>>, vector<1x1x64x256xbf16>
    %39 = vector.shape_cast %38 : vector<1x1x64x256xbf16> to vector<64x256xbf16>
    %cst_50 = arith.constant dense<0.000000e+00> : vector<96x256xf32>
    %40 = tpu.matmul %37, %39, %cst_50 {dimension_numbers = #tpu.dot_dimension_numbers<[1], [0], [0], [1], [0, 0, 1, 1], [], []>} : vector<96x64xbf16>, vector<64x256xbf16>, vector<96x256xf32> -> vector<96x256xf32>
    %41 = arith.addf %36, %40 : vector<96x256xf32>
    %c48 = arith.constant 48 : index
    %c0_51 = arith.constant 0 : index
    %42 = vector.load %arg9[%c48, %c0_51] : memref<152x64xbf16, #tpu.memory_space<vmem>>, vector<96x64xbf16>
    %c2_52 = arith.constant 2 : index
    %c0_53 = arith.constant 0 : index
    %c0_54 = arith.constant 0 : index
    %c0_55 = arith.constant 0 : index
    %43 = vector.load %arg6[%c2_52, %c0_53, %c0_54, %c0_55] : memref<3x3x64x256xbf16, #tpu.memory_space<vmem>>, vector<1x1x64x256xbf16>
    %44 = vector.shape_cast %43 : vector<1x1x64x256xbf16> to vector<64x256xbf16>
    %cst_56 = arith.constant dense<0.000000e+00> : vector<96x256xf32>
    %45 = tpu.matmul %42, %44, %cst_56 {dimension_numbers = #tpu.dot_dimension_numbers<[1], [0], [0], [1], [0, 0, 1, 1], [], []>} : vector<96x64xbf16>, vector<64x256xbf16>, vector<96x256xf32> -> vector<96x256xf32>
    %46 = arith.addf %41, %45 : vector<96x256xf32>
    %c49 = arith.constant 49 : index
    %c0_57 = arith.constant 0 : index
    %47 = vector.load %arg9[%c49, %c0_57] : memref<152x64xbf16, #tpu.memory_space<vmem>>, vector<96x64xbf16>
    %c2_58 = arith.constant 2 : index
    %c1_59 = arith.constant 1 : index
    %c0_60 = arith.constant 0 : index
    %c0_61 = arith.constant 0 : index
    %48 = vector.load %arg6[%c2_58, %c1_59, %c0_60, %c0_61] : memref<3x3x64x256xbf16, #tpu.memory_space<vmem>>, vector<1x1x64x256xbf16>
    %49 = vector.shape_cast %48 : vector<1x1x64x256xbf16> to vector<64x256xbf16>
    %cst_62 = arith.constant dense<0.000000e+00> : vector<96x256xf32>
    %50 = tpu.matmul %47, %49, %cst_62 {dimension_numbers = #tpu.dot_dimension_numbers<[1], [0], [0], [1], [0, 0, 1, 1], [], []>} : vector<96x64xbf16>, vector<64x256xbf16>, vector<96x256xf32> -> vector<96x256xf32>
    %51 = arith.addf %46, %50 : vector<96x256xf32>
    %c50 = arith.constant 50 : index
    %c0_63 = arith.constant 0 : index
    %52 = vector.load %arg9[%c50, %c0_63] : memref<152x64xbf16, #tpu.memory_space<vmem>>, vector<96x64xbf16>
    %c2_64 = arith.constant 2 : index
    %c2_65 = arith.constant 2 : index
    %c0_66 = arith.constant 0 : index
    %c0_67 = arith.constant 0 : index
    %53 = vector.load %arg6[%c2_64, %c2_65, %c0_66, %c0_67] : memref<3x3x64x256xbf16, #tpu.memory_space<vmem>>, vector<1x1x64x256xbf16>
    %54 = vector.shape_cast %53 : vector<1x1x64x256xbf16> to vector<64x256xbf16>
    %cst_68 = arith.constant dense<0.000000e+00> : vector<96x256xf32>
    %55 = tpu.matmul %52, %54, %cst_68 {dimension_numbers = #tpu.dot_dimension_numbers<[1], [0], [0], [1], [0, 0, 1, 1], [], []>} : vector<96x64xbf16>, vector<64x256xbf16>, vector<96x256xf32> -> vector<96x256xf32>
    %56 = arith.addf %51, %55 : vector<96x256xf32>
    %c0_69 = arith.constant 0 : index
    %c0_70 = arith.constant 0 : index
    %57 = vector.load %arg7[%c0_69, %c0_70] : memref<1x256xf32, #tpu.memory_space<vmem>>, vector<1x256xf32>
    %58 = vector.broadcast %57 : vector<1x256xf32> to vector<96x256xf32>
    %59 = arith.addf %56, %58 : vector<96x256xf32>
    %cst_71 = arith.constant 0.000000e+00 : f32
    %60 = vector.broadcast %cst_71 : f32 to vector<96x256xf32>
    %61 = arith.maximumf %59, %60 : vector<96x256xf32>
    %62 = arith.truncf %61 : vector<96x256xf32> to vector<96x256xbf16>
    %c0_72 = arith.constant 0 : index
    %c0_73 = arith.constant 0 : index
    %c0_74 = arith.constant 0 : index
    %63 = vector.load %arg8[%c0_72, %c0_73, %c0_74] : memref<1x96x256xbf16, #tpu.memory_space<vmem>>, vector<1x96x256xbf16>
    %64 = vector.shape_cast %63 : vector<1x96x256xbf16> to vector<96x256xbf16>
    %65 = vector.shape_cast %62 : vector<96x256xbf16> to vector<1x96x256xbf16>
    tpu.vector_store %arg8[%c0_72, %c0_73, %c0_74], %65 {strides = array<i32>} : memref<1x96x256xbf16, #tpu.memory_space<vmem>>, vector<1x96x256xbf16>,
    return
  }
  func.func @transform_0(%arg0: i32, %arg1: i32, %arg2: i32) -> (i32, i32, i32) {
    %c0_i32 = arith.constant 0 : i32
    %c0_i32_0 = arith.constant 0 : i32
    return %arg1, %arg2, %c0_i32 : i32, i32, i32
  }
  func.func @transform_1(%arg0: i32, %arg1: i32, %arg2: i32) -> (i32, i32, i32) {
    %c1_i32 = arith.constant 1 : i32
    %0 = arith.addi %arg2, %c1_i32 : i32
    %c4_i32 = arith.constant 4 : i32
    %1 = arith.muli %0, %c4_i32 : i32
    %c0_i32 = arith.constant 0 : i32
    %c0_i32_0 = arith.constant 0 : i32
    return %arg1, %1, %c0_i32 : i32, i32, i32
  }
  func.func @transform_2(%arg0: i32, %arg1: i32, %arg2: i32) -> (i32, i32, i32) {
    %c1_i32 = arith.constant 1 : i32
    %0 = arith.addi %arg2, %c1_i32 : i32
    %c4_i32 = arith.constant 4 : i32
    %1 = arith.muli %0, %c4_i32 : i32
    %c1_i32_0 = arith.constant 1 : i32
    %2 = arith.addi %1, %c1_i32_0 : i32
    %c0_i32 = arith.constant 0 : i32
    %c0_i32_1 = arith.constant 0 : i32
    return %arg1, %2, %c0_i32 : i32, i32, i32
  }
  func.func @transform_3(%arg0: i32, %arg1: i32, %arg2: i32) -> (i32, i32, i32, i32) {
    %c0_i32 = arith.constant 0 : i32
    %c0_i32_0 = arith.constant 0 : i32
    %c0_i32_1 = arith.constant 0 : i32
    %c0_i32_2 = arith.constant 0 : i32
    return %c0_i32, %c0_i32_0, %c0_i32_1, %arg0 : i32, i32, i32, i32
  }
  func.func @transform_4(%arg0: i32, %arg1: i32, %arg2: i32) -> (i32, i32) {
    %c0_i32 = arith.constant 0 : i32
    %c0_i32_0 = arith.constant 0 : i32
    return %c0_i32, %arg0 : i32, i32
  }
  func.func @transform_5(%arg0: i32, %arg1: i32, %arg2: i32) -> (i32, i32, i32) {
    %c0_i32 = arith.constant 0 : i32
    return %arg1, %arg2, %arg0 : i32, i32, i32
  }
}

</mosaic_0001>

<llo_original>
// kernel: tpu_custom_call.1
$region0: #{tpu_custom_call.1}
  #allocation0 [shape = 'u32[]', space=smem, size = 0x4, offset = 0x4, fixed_abs, tag = 'smem constant byte address 0x4 - core index']
  #allocation1 [shape = 'u32[144,128]{1,0:T(1,128)}', space=vmem, size = 0x12000, scoped, tag = 'internal scratch']
  #allocation2 [shape = 'bf16[152,64]{1,0:T(8,128)(2,1)}', space=vmem, size = 0x9800, scoped, tag = 'scratch operand']
  %s0 = inlined_call_operand.vmem [shape: bf16[1,432,64], index: 0, kind: input, shape index: {}]
  %s1 = inlined_call_operand.vmem [shape: bf16[1,432,64], index: 1, kind: input, shape index: {}]
  %s2 = inlined_call_operand.vmem [shape: bf16[1,432,64], index: 2, kind: input, shape index: {}]
  %s3 = inlined_call_operand.hbm [shape: bf16[3,3,64,512], index: 3, kind: input, shape index: {}]
  %s4 = inlined_call_operand.vmem [shape: f32[1,512], index: 4, kind: input, shape index: {}]
  %s5 = inlined_call_operand.hbm [shape: bf16[1,384,512], index: 5, kind: output, shape index: {}]
  %s6 = sld [smem:[#allocation0]]
  $region57: #{tpu_custom_call.1} parent=0
    _
  %s8 = ssub.s32 1, %s6
  %s9 = scalar_select 0, %s8, %s6
  $region1: #{tpu_custom_call.1} parent=0
    #allocation3 [shape = 'u8[589824]{0}', space=vmem, size = 0x90000, scoped, tag = 'input window, operand 3']
    #allocation4 [shape = 's32[2]{0}', space=sflag, size = 0x8, scoped, tag = 'scoped memory for tpu_custom_call.1']
    #allocation5 [shape = 's32[2]{0}', space=sflag, size = 0x8, scoped, tag = 'scoped memory for tpu_custom_call.1']
    #allocation6 [shape = 'u8[98304]{0}', space=vmem, size = 0x18000, scoped, tag = 'output window, operand 0']
    %10 = vsyncpa [#allocation4], 0
    %s11 = scalar_lea.sflag [#allocation4], 1
    %12 = vsyncpa %s11, 0
    %13 = vsyncpa [#allocation5], 0
    %s14 = scalar_lea.sflag [#allocation5], 1
    %15 = vsyncpa %s14, 0
    loop: start=0, step=1, limit=10
    $region2: #{tpu_custom_call.1} parent=1 // loop_pre_header
      _
    $region3: #{tpu_custom_call.1} parent=1 // loop_header
      %s17 = sphi 0, %s21
      %p18 = scmp.ge.s32.totalorder %s17, 10
      %s24 = sphi 0, %s43
      %s25 = sphi 0, %s39
      %s26 = sphi 0, %s35
      %s27 = sphi 0, %s24
      %s28 = sphi 0, %s25
      %s29 = sphi 0, %s26
      %s30 = sphi 0, %s27
      %s31 = sphi 0, %s28
      %s32 = sphi 0, %s29
      %s48 = sphi 0, %s50
      %s51 = sphi 0, %s48
      %s52 = sphi 0, %s51
      %s68 = sphi 0, %s52
      %s80 = sphi 0, %s82
      %s83 = sphi 0, %s80
      %s84 = sphi 0, %s83
      %s100 = sphi 0, %s84
      %s114 = sphi 0, %s116
      %s117 = sphi 0, %s114
      %s118 = sphi 0, %s117
      %s134 = sphi 0, %s118
      %s140 = sphi 0, %s142
      %s143 = sphi 0, %s140
      %s144 = sphi 0, %s143
      %s160 = sphi 0, %s144
      %s166 = sphi 0, %s168
      %s169 = sphi 0, %s166
      %s170 = sphi 0, %s169
      %s186 = sphi 0, %s170
      %s196 = sphi 0, %s198
      %s199 = sphi 0, %s196
      %s200 = sphi 0, %s199
      %s216 = sphi 0, %s200
    $region4: #{tpu_custom_call.1} parent=1 // loop_header_branch
      %20 = sbr.rel (%p18) target = $region8
    $region5: #{tpu_custom_call.1} parent=1 // loop_body
      %s22 = ssub.s32 %s17, 1
      %s23 = ssub.s32 %s17, 2
      %s33 = sadd.s32 1, %s26
      %p34 = scmp.ge.s32.totalorder %s33, 4
      %s35 = scalar_select %p34, 0, %s33
      %s36 = sadd.s32 1, %s25
      %s37 = scalar_select %p34, %s36, %s25
      %p38 = scmp.ge.s32.totalorder %s37, 1
      %s39 = scalar_select %p38, 0, %s37
      %s40 = sadd.s32 1, %s24
      %s41 = scalar_select %p38, %s40, %s24
      %p42 = scmp.ge.s32.totalorder %s41, 2
      %s43 = scalar_select %p42, 0, %s41
      %s44 = ssub.s32 %s25, %s39
      %s45 = ssub.s32 %s26, %s35
      %s46 = sor.u32 %s44, %s45
      %p47 = scmp.eq.s32.totalorder %s46, 0
      %s49 = sadd.s32 %s48, 1
      %s50 = scalar_select %p47, %s48, %s49
      %p53 = pneg %p47
      %p54 = scmp.eq.s32.totalorder %s17, 7
      %p55 = por %p53, %p54
      %p56 = scmp.ne.s32.totalorder %s48, %s51
      %p57 = scmp.eq.s32.totalorder %s17, 0
      %p58 = por %p56, %p57
      %p59 = scmp.ne.s32.totalorder %s48, %s51
      %p60 = scmp.eq.s32.totalorder %s22, 7
      %p61 = por %p59, %p60
      %p62 = scmp.ne.s32.totalorder %s51, %s52
      %p63 = scmp.eq.s32.totalorder %s22, 0
      %p64 = por %p62, %p63
      %p65 = scmp.ne.s32.totalorder %s51, %s52
      %p66 = scmp.eq.s32.totalorder %s23, 7
      %p67 = por %p65, %p66
      %p69 = scmp.ne.s32.totalorder %s52, %s68
      %p70 = scmp.eq.s32.totalorder %s23, 0
      %p71 = por %p69, %p70
      %s72 = sadd.s32 %s26, 1
      %s73 = smul.u32 %s72, 4
      %s74 = sadd.s32 %s35, 1
      %s75 = smul.u32 %s74, 4
      %s76 = ssub.s32 %s25, %s39
      %s77 = ssub.s32 %s73, %s75
      %s78 = sor.u32 %s76, %s77
      %p79 = scmp.eq.s32.totalorder %s78, 0
      %s81 = sadd.s32 %s80, 1
      %s82 = scalar_select %p79, %s80, %s81
      %p85 = pneg %p79
      %p86 = scmp.eq.s32.totalorder %s17, 7
      %p87 = por %p85, %p86
      %p88 = scmp.ne.s32.totalorder %s80, %s83
      %p89 = scmp.eq.s32.totalorder %s17, 0
      %p90 = por %p88, %p89
      %p91 = scmp.ne.s32.totalorder %s80, %s83
      %p92 = scmp.eq.s32.totalorder %s22, 7
      %p93 = por %p91, %p92
      %p94 = scmp.ne.s32.totalorder %s83, %s84
      %p95 = scmp.eq.s32.totalorder %s22, 0
      %p96 = por %p94, %p95
      %p97 = scmp.ne.s32.totalorder %s83, %s84
      %p98 = scmp.eq.s32.totalorder %s23, 7
      %p99 = por %p97, %p98
      %p101 = scmp.ne.s32.totalorder %s84, %s100
      %p102 = scmp.eq.s32.totalorder %s23, 0
      %p103 = por %p101, %p102
      %s104 = sadd.s32 %s26, 1
      %s105 = smul.u32 %s104, 4
      %s106 = sadd.s32 %s105, 1
      %s107 = sadd.s32 %s35, 1
      %s108 = smul.u32 %s107, 4
      %s109 = sadd.s32 %s108, 1
      %s110 = ssub.s32 %s25, %s39
      %s111 = ssub.s32 %s106, %s109
      %s112 = sor.u32 %s110, %s111
      %p113 = scmp.eq.s32.totalorder %s112, 0
      %s115 = sadd.s32 %s114, 1
      %s116 = scalar_select %p113, %s114, %s115
      %p119 = pneg %p113
      %p120 = scmp.eq.s32.totalorder %s17, 7
      %p121 = por %p119, %p120
      %p122 = scmp.ne.s32.totalorder %s114, %s117
      %p123 = scmp.eq.s32.totalorder %s17, 0
      %p124 = por %p122, %p123
      %p125 = scmp.ne.s32.totalorder %s114, %s117
      %p126 = scmp.eq.s32.totalorder %s22, 7
      %p127 = por %p125, %p126
      %p128 = scmp.ne.s32.totalorder %s117, %s118
      %p129 = scmp.eq.s32.totalorder %s22, 0
      %p130 = por %p128, %p129
      %p131 = scmp.ne.s32.totalorder %s117, %s118
      %p132 = scmp.eq.s32.totalorder %s23, 7
      %p133 = por %p131, %p132
      %p135 = scmp.ne.s32.totalorder %s118, %s134
      %p136 = scmp.eq.s32.totalorder %s23, 0
      %p137 = por %p135, %p136
      %s138 = ssub.s32 %s24, %s43
      %p139 = scmp.eq.s32.totalorder %s138, 0
      %s141 = sadd.s32 %s140, 1
      %s142 = scalar_select %p139, %s140, %s141
      %p145 = pneg %p139
      %p146 = scmp.eq.s32.totalorder %s17, 7
      %p147 = por %p145, %p146
      %p148 = scmp.ne.s32.totalorder %s140, %s143
      %p149 = scmp.eq.s32.totalorder %s17, 0
      %p150 = por %p148, %p149
      %p151 = scmp.ne.s32.totalorder %s140, %s143
      %p152 = scmp.eq.s32.totalorder %s22, 7
      %p153 = por %p151, %p152
      %p154 = scmp.ne.s32.totalorder %s143, %s144
      %p155 = scmp.eq.s32.totalorder %s22, 0
      %p156 = por %p154, %p155
      %p157 = scmp.ne.s32.totalorder %s143, %s144
      %p158 = scmp.eq.s32.totalorder %s23, 7
      %p159 = por %p157, %p158
      %p161 = scmp.ne.s32.totalorder %s144, %s160
      %p162 = scmp.eq.s32.totalorder %s23, 0
      %p163 = por %p161, %p162
      %s164 = ssub.s32 %s24, %s43
      %p165 = scmp.eq.s32.totalorder %s164, 0
      %s167 = sadd.s32 %s166, 1
      %s168 = scalar_select %p165, %s166, %s167
      %p171 = pneg %p165
      %p172 = scmp.eq.s32.totalorder %s17, 7
      %p173 = por %p171, %p172
      %p174 = scmp.ne.s32.totalorder %s166, %s169
      %p175 = scmp.eq.s32.totalorder %s17, 0
      %p176 = por %p174, %p175
      %p177 = scmp.ne.s32.totalorder %s166, %s169
      %p178 = scmp.eq.s32.totalorder %s22, 7
      %p179 = por %p177, %p178
      %p180 = scmp.ne.s32.totalorder %s169, %s170
      %p181 = scmp.eq.s32.totalorder %s22, 0
      %p182 = por %p180, %p181
      %p183 = scmp.ne.s32.totalorder %s169, %s170
      %p184 = scmp.eq.s32.totalorder %s23, 7
      %p185 = por %p183, %p184
      %p187 = scmp.ne.s32.totalorder %s170, %s186
      %p188 = scmp.eq.s32.totalorder %s23, 0
      %p189 = por %p187, %p188
      %s190 = ssub.s32 %s25, %s39
      %s191 = ssub.s32 %s26, %s35
      %s192 = sor.u32 %s190, %s191
      %s193 = ssub.s32 %s24, %s43
      %s194 = sor.u32 %s192, %s193
      %p195 = scmp.eq.s32.totalorder %s194, 0
      %s197 = sadd.s32 %s196, 1
      %s198 = scalar_select %p195, %s196, %s197
      %p201 = pneg %p195
      %p202 = scmp.eq.s32.totalorder %s17, 7
      %p203 = por %p201, %p202
      %p204 = scmp.ne.s32.totalorder %s196, %s199
      %p205 = scmp.eq.s32.totalorder %s17, 0
      %p206 = por %p204, %p205
      %p207 = scmp.ne.s32.totalorder %s196, %s199
      %p208 = scmp.eq.s32.totalorder %s22, 7
      %p209 = por %p207, %p208
      %p210 = scmp.ne.s32.totalorder %s199, %s200
      %p211 = scmp.eq.s32.totalorder %s22, 0
      %p212 = por %p210, %p211
      %p213 = scmp.ne.s32.totalorder %s199, %s200
      %p214 = scmp.eq.s32.totalorder %s23, 7
      %p215 = por %p213, %p214
      %p217 = scmp.ne.s32.totalorder %s200, %s216
      %p218 = scmp.eq.s32.totalorder %s23, 0
      %p219 = por %p217, %p218
      %p220 = scmp.le.s32.totalorder 1, %s17
      %p221 = scmp.lt.s32.totalorder %s17, 9
      %p222 = pnand %p220, %p221
      %p223 = pneg %p222
      // Predicated region
      $region9: #{tpu_custom_call.1} parent=5 // pred_check
        _
      $region10: #{tpu_custom_call.1} parent=5 // pred_check_branch
        %225 = sbr.rel (%p222) target = $region12
      $region11: #{tpu_custom_call.1} parent=5 // pred_region
        %s226 = ssub.s32 %s17, 1
      $region12: #{tpu_custom_call.1} parent=5 // pred_fallthru
        _
      %p227 = scmp.lt.s32.totalorder %s17, 8
      // Predicated region
      $region13: #{tpu_custom_call.1} parent=5 // pred_check
        %p228 = pneg %p227
      $region14: #{tpu_custom_call.1} parent=5 // pred_check_branch
        %230 = sbr.rel (%p228) target = $region16
      $region15: #{tpu_custom_call.1} parent=5 // pred_region
        // Predicated region
        $region17: #{tpu_custom_call.1} parent=15 // pred_check
          %p231 = pneg %p58
        $region18: #{tpu_custom_call.1} parent=15 // pred_check_branch
          %233 = sbr.rel (%p231) target = $region20
        $region19: #{tpu_custom_call.1} parent=15 // pred_region
          %s234 = smul.u32 12, %s26
          %s235 = ssub.s32 54, %s234
          %p236 = scmp.lt.s32.totalorder %s235, 12
          %s237 = scalar_select %p236, %s235, 12
          %s238 = smul.u32 64, %s237
          %p239 = scmp.lt.s32.totalorder %s25, 0
          %s240 = scalar_select %p239, %s25, 0
          %p241 = scmp.lt.s32.totalorder %s234, 53
          %s242 = scalar_select %p241, %s234, 53
          %s243 = smul.addr %s240, 54
          %s244 = sadd.s32 %s242, %s243
          %s245 = smul.addr %s244, 4
          %s246 = scalar_lea.vmem %s0, %s245
          %s247 = smul.u32 12, %s26
          %s248 = ssub.s32 54, %s247
          %p249 = scmp.lt.s32.totalorder %s248, 12
          %s250 = scalar_select %p249, %s248, 12
          %s251 = smul.u32 64, %s250
        $region20: #{tpu_custom_call.1} parent=15 // pred_fallthru
          _
        // Predicated region
        $region21: #{tpu_custom_call.1} parent=15 // pred_check
          %p252 = pneg %p90
        $region22: #{tpu_custom_call.1} parent=15 // pred_check_branch
          %254 = sbr.rel (%p252) target = $region24
        $region23: #{tpu_custom_call.1} parent=15 // pred_region
          %s255 = sadd.s32 %s26, 1
          %s256 = smul.u32 %s255, 4
          %s257 = smul.u32 3, %s256
          %p258 = scmp.lt.s32.totalorder %s25, 0
          %s259 = scalar_select %p258, %s25, 0
          %p260 = scmp.lt.s32.totalorder %s257, 53
          %s261 = scalar_select %p260, %s257, 53
          %s262 = smul.addr %s259, 54
          %s263 = sadd.s32 %s261, %s262
          %s264 = smul.addr %s263, 4
          %s265 = scalar_lea.vmem %s1, %s264
          %s266 = sadd.s32 %s26, 1
          %s267 = smul.u32 %s266, 4
          %s268 = smul.u32 3, %s267
        $region24: #{tpu_custom_call.1} parent=15 // pred_fallthru
          _
        // Predicated region
        $region25: #{tpu_custom_call.1} parent=15 // pred_check
          %p269 = pneg %p124
        $region26: #{tpu_custom_call.1} parent=15 // pred_check_branch
          %271 = sbr.rel (%p269) target = $region28
        $region27: #{tpu_custom_call.1} parent=15 // pred_region
          %s272 = sadd.s32 %s26, 1
          %s273 = smul.u32 %s272, 4
          %s274 = sadd.s32 %s273, 1
          %s275 = smul.u32 3, %s274
          %p276 = scmp.lt.s32.totalorder %s25, 0
          %s277 = scalar_select %p276, %s25, 0
          %p278 = scmp.lt.s32.totalorder %s275, 53
          %s279 = scalar_select %p278, %s275, 53
          %s280 = smul.addr %s277, 54
          %s281 = sadd.s32 %s279, %s280
          %s282 = smul.addr %s281, 4
          %s283 = scalar_lea.vmem %s2, %s282
          %s284 = sadd.s32 %s26, 1
          %s285 = smul.u32 %s284, 4
          %s286 = sadd.s32 %s285, 1
          %s287 = smul.u32 3, %s286
        $region28: #{tpu_custom_call.1} parent=15 // pred_fallthru
          _
        // Predicated region
        $region29: #{tpu_custom_call.1} parent=15 // pred_check
          %p288 = pneg %p150
        $region30: #{tpu_custom_call.1} parent=15 // pred_check_branch
          %290 = sbr.rel (%p288) target = $region32
        $region31: #{tpu_custom_call.1} parent=15 // pred_region
          %s291 = sand.u32 %s140, 1
          %s292 = scalar_lea.sflag [#allocation4], %s291
          %s293 = sand.u32 %s140, 1
          %s294 = smul.addr %s293, 576
          %s295 = scalar_lea.vmem [#allocation3], %s294
          %s296 = smul.u32 2, %s24
          %s298 = ssub.s32 9216, 9216
          %299 = vsyncadd %s292, %s298
          %s300 = smul.addr %s296, 64
          %s301 = scalar_lea.hbm %s3, %s300
          %s302 = sshll.u32 %s295, 4
          %s303 = int_to_ptr.vmem [resolvable:$true] %s302
          %308 = dma.hbm_to_vmem [thread:$0]  %s301, 9216, %s303, %s292, 256, 128, 8
        $region32: #{tpu_custom_call.1} parent=15 // pred_fallthru
          _
        // Predicated region
        $region33: #{tpu_custom_call.1} parent=15 // pred_check
          %p309 = pneg %p176
        $region34: #{tpu_custom_call.1} parent=15 // pred_check_branch
          %311 = sbr.rel (%p309) target = $region36
        $region35: #{tpu_custom_call.1} parent=15 // pred_region
          %s312 = smul.u32 2, %s24
          %p313 = scmp.lt.s32.totalorder %s312, 3
          %s314 = scalar_select %p313, %s312, 3
          %s315 = scalar_lea.vmem %s4, %s314
          %s316 = smul.u32 2, %s24
        $region36: #{tpu_custom_call.1} parent=15 // pred_fallthru
          _
      $region16: #{tpu_custom_call.1} parent=5 // pred_fallthru
        _
      %p317 = scmp.le.s32.totalorder 1, %s17
      %p318 = scmp.lt.s32.totalorder %s17, 9
      %p319 = pnand %p317, %p318
      %p320 = pneg %p319
      // Predicated region
      $region37: #{tpu_custom_call.1} parent=5 // pred_check
        _
      $region38: #{tpu_custom_call.1} parent=5 // pred_check_branch
        %322 = sbr.rel (%p319) target = $region40
      $region39: #{tpu_custom_call.1} parent=5 // pred_region
        %s323 = ssub.s32 %s17, 1
        %s324 = sand.u32 %s143, 1
        %s325 = scalar_lea.sflag [#allocation4], %s324
        %s326 = sand.u32 %s143, 1
        %s327 = smul.addr %s326, 576
        %s328 = scalar_lea.vmem [#allocation3], %s327
        // Predicated region
        $region41: #{tpu_custom_call.1} parent=39 // pred_check
          %p329 = pneg %p156
        $region42: #{tpu_custom_call.1} parent=39 // pred_check_branch
          %331 = sbr.rel (%p329) target = $region44
        $region43: #{tpu_custom_call.1} parent=39 // pred_region
          %332 = dma.done %s325, 9216
        $region44: #{tpu_custom_call.1} parent=39 // pred_fallthru
          _
        %s333 = smul.u32 12, %s29
        %s334 = ssub.s32 54, %s333
        %p335 = scmp.lt.s32.totalorder %s334, 12
        %s336 = scalar_select %p335, %s334, 12
        %s337 = smul.u32 64, %s336
        %p338 = scmp.lt.s32.totalorder %s28, 0
        %s339 = scalar_select %p338, %s28, 0
        %p340 = scmp.lt.s32.totalorder %s333, 53
        %s341 = scalar_select %p340, %s333, 53
        %s342 = smul.addr %s339, 54
        %s343 = sadd.s32 %s341, %s342
        %s344 = smul.addr %s343, 4
        %s345 = scalar_lea.vmem %s0, %s344
        %p346 = pneg %p64
        %p347 = pneg %p61
        %s348 = sadd.s32 %s29, 1
        %s349 = smul.u32 %s348, 4
        %s350 = smul.u32 3, %s349
        %p351 = scmp.lt.s32.totalorder %s28, 0
        %s352 = scalar_select %p351, %s28, 0
        %p353 = scmp.lt.s32.totalorder %s350, 53
        %s354 = scalar_select %p353, %s350, 53
        %s355 = smul.addr %s352, 54
        %s356 = sadd.s32 %s354, %s355
        %s357 = smul.addr %s356, 4
        %s358 = scalar_lea.vmem %s1, %s357
        %p359 = pneg %p96
        %p360 = pneg %p93
        %s361 = sadd.s32 %s29, 1
        %s362 = smul.u32 %s361, 4
        %s363 = sadd.s32 %s362, 1
        %s364 = smul.u32 3, %s363
        %p365 = scmp.lt.s32.totalorder %s28, 0
        %s366 = scalar_select %p365, %s28, 0
        %p367 = scmp.lt.s32.totalorder %s364, 53
        %s368 = scalar_select %p367, %s364, 53
        %s369 = smul.addr %s366, 54
        %s370 = sadd.s32 %s368, %s369
        %s371 = smul.addr %s370, 4
        %s372 = scalar_lea.vmem %s2, %s371
        %p373 = pneg %p130
        %p374 = pneg %p127
        %s375 = sand.u32 %s143, 1
        %s376 = scalar_lea.sflag [#allocation4], %s375
        %s377 = sand.u32 %s143, 1
        %s378 = smul.addr %s377, 576
        %s379 = scalar_lea.vmem [#allocation3], %s378
        %p380 = pneg %p156
        %p381 = pneg %p153
        %s382 = smul.u32 2, %s27
        %p383 = scmp.lt.s32.totalorder %s382, 3
        %s384 = scalar_select %p383, %s382, 3
        %s385 = scalar_lea.vmem %s4, %s384
        %p386 = pneg %p182
        %p387 = pneg %p179
        %p388 = pneg %p212
        %p389 = pneg %p209
        %s390 = sand.u32 %s199, 1
        %s391 = scalar_lea.sflag [#allocation5], %s390
        %s392 = sand.u32 %s199, 1
        %s393 = smul.addr %s392, 96
        %s394 = scalar_lea.vmem [#allocation6], %s393
        %s395 = smul.u32 12, %s29
        %s396 = ssub.s32 54, %s395
        %p397 = scmp.lt.s32.totalorder %s396, 12
        %s398 = scalar_select %p397, %s396, 12
        %s399 = smul.u32 64, %s398
        %p400 = scmp.lt.s32.totalorder %s28, 0
        %s401 = scalar_select %p400, %s28, 0
        %p402 = scmp.lt.s32.totalorder %s395, 53
        %s403 = scalar_select %p402, %s395, 53
        %s404 = smul.addr %s401, 54
        %s405 = sadd.s32 %s403, %s404
        %s406 = smul.addr %s405, 4
        %s407 = scalar_lea.vmem %s0, %s406
        %s408 = smul.u32 12, %s29
        %s409 = ssub.s32 54, %s408
        %p410 = scmp.lt.s32.totalorder %s409, 12
        %s411 = scalar_select %p410, %s409, 12
        %s412 = smul.u32 64, %s411
        %s413 = sadd.s32 %s29, 1
        %s414 = smul.u32 %s413, 4
        %s415 = smul.u32 3, %s414
        %p416 = scmp.lt.s32.totalorder %s28, 0
        %s417 = scalar_select %p416, %s28, 0
        %p418 = scmp.lt.s32.totalorder %s415, 53
        %s419 = scalar_select %p418, %s415, 53
        %s420 = smul.addr %s417, 54
        %s421 = sadd.s32 %s419, %s420
        %s422 = smul.addr %s421, 4
        %s423 = scalar_lea.vmem %s1, %s422
        %s424 = sadd.s32 %s29, 1
        %s425 = smul.u32 %s424, 4
        %s426 = smul.u32 3, %s425
        %s427 = sadd.s32 %s29, 1
        %s428 = smul.u32 %s427, 4
        %s429 = sadd.s32 %s428, 1
        %s430 = smul.u32 3, %s429
        %p431 = scmp.lt.s32.totalorder %s28, 0
        %s432 = scalar_select %p431, %s28, 0
        %p433 = scmp.lt.s32.totalorder %s430, 53
        %s434 = scalar_select %p433, %s430, 53
        %s435 = smul.addr %s432, 54
        %s436 = sadd.s32 %s434, %s435
        %s437 = smul.addr %s436, 4
        %s438 = scalar_lea.vmem %s2, %s437
        %s439 = sadd.s32 %s29, 1
        %s440 = smul.u32 %s439, 4
        %s441 = sadd.s32 %s440, 1
        %s442 = smul.u32 3, %s441
        %s443 = smul.u32 2, %s27
        %s444 = smul.u32 2, %s27
        %p445 = scmp.lt.s32.totalorder %s444, 3
        %s446 = scalar_select %p445, %s444, 3
        %s447 = scalar_lea.vmem %s4, %s446
        %s448 = smul.u32 2, %s27
        %s449 = smul.u32 12, %s29
        %s450 = smul.u32 2, %s27
        %v452 = vld [vmem:[%s407] sm:$0xf]
        %v453 = vld [vmem:[%s407 + $0x4] sm:$0xf]
        %v454 = vld [vmem:[%s407 + $0x8] sm:$0xf]
        %v455 = vld [vmem:[%s407 + $0xc] sm:$0xf]
        %v456 = vld [vmem:[%s407 + $0x10] sm:$0xf]
        %v457 = vld [vmem:[%s407 + $0x14] sm:$0xf]
        %v458 = vld [vmem:[%s407 + $0x18] sm:$0xf]
        %v459 = vld [vmem:[%s407 + $0x1c] sm:$0xf]
        %v460 = vld [vmem:[%s407 + $0x20] sm:$0xf]
        %v461 = vld [vmem:[%s407 + $0x24] sm:$0xf]
        %v462 = vld [vmem:[%s407 + $0x28] sm:$0xf]
        %v463 = vld [vmem:[%s407 + $0x2c] sm:$0xf]
        %vm464 = vcmask 519168
        %465 = vst.msk [vmem:[#allocation2] sm:$0xf] %vm464, %v452
        %466 = vst.msk [vmem:[#allocation2 + $0x4] sm:$0xf] %vm464, %v453
        %467 = vst.msk [vmem:[#allocation2 + $0x8] sm:$0xf] %vm464, %v454
        %468 = vst.msk [vmem:[#allocation2 + $0xc] sm:$0xf] %vm464, %v455
        %469 = vst.msk [vmem:[#allocation2 + $0x10] sm:$0xf] %vm464, %v456
        %470 = vst.msk [vmem:[#allocation2 + $0x14] sm:$0xf] %vm464, %v457
        %471 = vst.msk [vmem:[#allocation2 + $0x18] sm:$0xf] %vm464, %v458
        %472 = vst.msk [vmem:[#allocation2 + $0x1c] sm:$0xf] %vm464, %v459
        %473 = vst.msk [vmem:[#allocation2 + $0x20] sm:$0xf] %vm464, %v460
        %474 = vst.msk [vmem:[#allocation2 + $0x24] sm:$0xf] %vm464, %v461
        %475 = vst.msk [vmem:[#allocation2 + $0x28] sm:$0xf] %vm464, %v462
        %476 = vst.msk [vmem:[#allocation2 + $0x2c] sm:$0xf] %vm464, %v463
        %v477 = vld [vmem:[%s423] sm:$0xf]
        %v478 = vld [vmem:[%s423 + $0x4] sm:$0xf]
        %v479 = vld [vmem:[%s423 + $0x8] sm:$0xf]
        %480 = vst.msk [vmem:[#allocation2 + $0x30] sm:$0xf] %vm464, %v477
        %481 = vst.msk [vmem:[#allocation2 + $0x34] sm:$0xf] %vm464, %v478
        %482 = vst.msk [vmem:[#allocation2 + $0x38] sm:$0xf] %vm464, %v479
        %v483 = vld [vmem:[%s438] sm:$0xf]
        %v484 = vld [vmem:[%s438 + $0x4] sm:$0xf]
        %v485 = vld [vmem:[%s438 + $0x8] sm:$0xf]
        %486 = vst.msk [vmem:[#allocation2 + $0x3c] sm:$0xf] %vm464, %v483
        %487 = vst.msk [vmem:[#allocation2 + $0x40] sm:$0xf] %vm464, %v484
        %488 = vst.msk [vmem:[#allocation2 + $0x44] sm:$0xf] %vm464, %v485
        %489 = vst.msk [vmem:[#allocation2 + $0x48] sm:$0xf] %vm464, 0
        %v490 = vld [vmem:[#allocation2] sm:$0xf]
        %v491 = vld [vmem:[#allocation2 + $0x4] sm:$0xf]
        %v492 = vld [vmem:[#allocation2 + $0x8] sm:$0xf]
        %v493 = vld [vmem:[#allocation2 + $0xc] sm:$0xf]
        %v494 = vld [vmem:[#allocation2 + $0x10] sm:$0xf]
        %v495 = vld [vmem:[#allocation2 + $0x14] sm:$0xf]
        %v496 = vld [vmem:[#allocation2 + $0x18] sm:$0xf]
        %v497 = vld [vmem:[#allocation2 + $0x1c] sm:$0xf]
        %v498 = vld [vmem:[#allocation2 + $0x20] sm:$0xf]
        %v499 = vld [vmem:[#allocation2 + $0x24] sm:$0xf]
        %v500 = vld [vmem:[#allocation2 + $0x28] sm:$0xf]
        %v501 = vld [vmem:[#allocation2 + $0x2c] sm:$0xf]
        %v502 = vld [vmem:[%s328] sm:$0xff]
        %v503 = vld [vmem:[%s328 + $0x8] sm:$0xff]
        %v504 = vld [vmem:[%s328 + $0x10] sm:$0xff]
        %v505 = vld [vmem:[%s328 + $0x18] sm:$0xff]
        %v506 = vld [vmem:[%s328 + $0x20] sm:$0xff]
        %v507 = vld [vmem:[%s328 + $0x28] sm:$0xff]
        %v508 = vld [vmem:[%s328 + $0x30] sm:$0xff]
        %v509 = vld [vmem:[%s328 + $0x38] sm:$0xff]
        %v510 = vld [vmem:[#allocation2 + $0x30] sm:$0x1]
        %s511 = scalar_lea.vmem %s328, 64 [#allocation3]
        %v512 = vld [vmem:[%s511] sm:$0xff]
        %v513 = vld [vmem:[%s511 + $0x8] sm:$0xff]
        %v514 = vld [vmem:[%s511 + $0x10] sm:$0xff]
        %v515 = vld [vmem:[%s511 + $0x18] sm:$0xff]
        %v516 = vld [vmem:[%s511 + $0x20] sm:$0xff]
        %v517 = vld [vmem:[%s511 + $0x28] sm:$0xff]
        %v518 = vld [vmem:[%s511 + $0x30] sm:$0xff]
        %v519 = vld [vmem:[%s511 + $0x38] sm:$0xff]
        %v533 = vunpack.c.l.b16 %v490
        %v534 = vunpack.c.l.b16 %v491
        %v535 = vunpack.c.l.b16 %v492
        %v536 = vunpack.c.l.b16 %v493
        %v537 = vunpack.c.l.b16 %v494
        %v538 = vunpack.c.l.b16 %v495
        %v539 = vunpack.c.l.b16 %v496
        %v540 = vunpack.c.l.b16 %v497
        %v541 = vunpack.c.l.b16 %v498
        %v542 = vunpack.c.l.b16 %v499
        %v543 = vunpack.c.l.b16 %v500
        %v544 = vunpack.c.l.b16 %v501
        %v545 = vunpack.c.l.b16 %v510
        %v546 = vpack.c.b16 %v534, %v533
        %v547 = vpack.c.b16 %v536, %v535
        %v548 = vpack.c.b16 %v538, %v537
        %v549 = vpack.c.b16 %v540, %v539
        %v550 = vpack.c.b16 %v542, %v541
        %v551 = vpack.c.b16 %v544, %v543
        %v552 = vpack.c.b16 %v545, %v545
        %vm553 = vsmask.f32 7424
        %v555 = vshrl.u32 %v546, 16
        %v557 = vshll.u32 %v546, 16
        %v559 = vrot.slane %v557, 1
        %v560 = vor.u32 %v555, %v559
        %v562 = vshll.u32 %v547, 16
        %v564 = vrot.slane %v562, 1
        %v565 = vsel %vm553, %v560, %v564
        %v566 = vshrl.u32 %v547, 16
        %v568 = vor.u32 %v566, %v564
        %v570 = vshll.u32 %v548, 16
        %v572 = vrot.slane %v570, 1
        %v573 = vsel %vm553, %v568, %v572
        %v574 = vshrl.u32 %v548, 16
        %v576 = vor.u32 %v574, %v572
        %v578 = vshll.u32 %v549, 16
        %v580 = vrot.slane %v578, 1
        %v581 = vsel %vm553, %v576, %v580
        %v582 = vshrl.u32 %v549, 16
        %v584 = vor.u32 %v582, %v580
        %v586 = vshll.u32 %v550, 16
        %v588 = vrot.slane %v586, 1
        %v589 = vsel %vm553, %v584, %v588
        %v590 = vshrl.u32 %v550, 16
        %v592 = vor.u32 %v590, %v588
        %v594 = vshll.u32 %v551, 16
        %v596 = vrot.slane %v594, 1
        %v597 = vsel %vm553, %v592, %v596
        %v598 = vshrl.u32 %v551, 16
        %v600 = vor.u32 %v598, %v596
        %v602 = vshll.u32 %v552, 16
        %v604 = vrot.slane %v602, 1
        %v605 = vsel %vm553, %v600, %v604
        %v614 = vunpack.c.l.b16 %v512
        %v615 = vunpack.c.h.b16 %v512
        %v616 = vunpack.c.l.b16 %v513
        %v617 = vunpack.c.h.b16 %v513
        %v618 = vunpack.c.l.b16 %v514
        %v619 = vunpack.c.h.b16 %v514
        %v620 = vunpack.c.l.b16 %v515
        %v621 = vunpack.c.h.b16 %v515
        %v622 = vunpack.c.l.b16 %v516
        %v623 = vunpack.c.h.b16 %v516
        %v624 = vunpack.c.l.b16 %v517
        %v625 = vunpack.c.h.b16 %v517
        %v626 = vunpack.c.l.b16 %v518
        %v627 = vunpack.c.h.b16 %v518
        %v628 = vunpack.c.l.b16 %v519
        %v629 = vunpack.c.h.b16 %v519
        %v630 = vpack.c.b16 %v616, %v614
        %v631 = vpack.c.b16 %v617, %v615
        %v632 = vpack.c.b16 %v620, %v618
        %v633 = vpack.c.b16 %v621, %v619
        %v634 = vpack.c.b16 %v624, %v622
        %v635 = vpack.c.b16 %v625, %v623
        %v636 = vpack.c.b16 %v628, %v626
        %v637 = vpack.c.b16 %v629, %v627
        %vm646 = vcmask 523264
        %v648 = vsel %vm646, %v565, 0
        %v651 = vsel %vm646, %v573, 0
        %v654 = vsel %vm646, %v581, 0
        %v657 = vsel %vm646, %v589, 0
        %v660 = vsel %vm646, %v597, 0
        %v663 = vsel %vm646, %v605, 0
        %665 = vmatprep.subr.bf16.mxu0 %v631
        %666 = vmatpush1.bf16.msra.mxu0 %v630
        %667 = vmatprep.subr.bf16.mxu0 %v633
        %668 = vmatpush1.bf16.msra.mxu0 %v632
        %669 = vmatprep.subr.bf16.mxu0 %v635
        %670 = vmatpush1.bf16.msra.mxu0 %v634
        %671 = vmatprep.subr.bf16.mxu0 %v637
        %672 = vmatpush1.bf16.msra.mxu0 %v636
        %673 = vmatprep.subr.bf16.mxu0 0
        %674 = vmatpush1.bf16.msra.mxu0 0
        %675 = vmatprep.subr.bf16.mxu0 0
        %676 = vmatpush1.bf16.msra.mxu0 0
        %677 = vmatprep.subr.bf16.mxu0 0
        %678 = vmatpush1.bf16.msra.mxu0 0
        %679 = vmatprep.subr.bf16.mxu0 0
        %680 = vmatpush1.bf16.msra.mxu0 0
        %681 = vmatprep.subr.bf16.mxu0 0
        %682 = vmatpush1.bf16.msra.mxu0 0
        %683 = vmatprep.subr.bf16.mxu0 0
        %684 = vmatpush1.bf16.msra.mxu0 0
        %685 = vmatprep.subr.bf16.mxu0 0
        %686 = vmatpush1.bf16.msra.mxu0 0
        %687 = vmatprep.subr.bf16.mxu0 0
        %688 = vmatpush1.bf16.msra.mxu0 0
        %689 = vmatprep.subr.bf16.mxu0 0
        %690 = vmatpush1.bf16.msra.mxu0 0
        %691 = vmatprep.subr.bf16.mxu0 0
        %692 = vmatpush1.bf16.msra.mxu0 0
        %693 = vmatprep.subr.bf16.mxu0 0
        %694 = vmatpush1.bf16.msra.mxu0 0
        %695 = vmatprep.subr.bf16.mxu0 0
        %696 = vmatpush1.bf16.msra.mxu0 0
        %697 = vmatprep.mubr.bf16.mxu0 0
        %698 = vmatmul.mubr.bf16.gmra.mrb[0].mxu0 %v648
        %v699 = vpop.f32.mrb[0].mxu0
        %v700 = vadd.f32 0.0, %v699
        %v701 = vpop.f32.mrb[0].mxu0
        %v702 = vadd.f32 0.0, %v701
        %v703 = vpop.f32.mrb[0].mxu0
        %v704 = vadd.f32 0.0, %v703
        %v705 = vpop.f32.mrb[0].mxu0
        %v706 = vadd.f32 0.0, %v705
        %707 = vmatprep.mubr.bf16.mxu0 0
        %708 = vmatmul.mubr.bf16.gmra.mrb[0].mxu0 %v651
        %v709 = vpop.f32.mrb[0].mxu0
        %v710 = vadd.f32 0.0, %v709
        %v711 = vpop.f32.mrb[0].mxu0
        %v712 = vadd.f32 0.0, %v711
        %v713 = vpop.f32.mrb[0].mxu0
        %v714 = vadd.f32 0.0, %v713
        %v715 = vpop.f32.mrb[0].mxu0
        %v716 = vadd.f32 0.0, %v715
        %717 = vmatprep.mubr.bf16.mxu0 0
        %718 = vmatmul.mubr.bf16.gmra.mrb[0].mxu0 %v654
        %v719 = vpop.f32.mrb[0].mxu0
        %v720 = vadd.f32 0.0, %v719
        %v721 = vpop.f32.mrb[0].mxu0
        %v722 = vadd.f32 0.0, %v721
        %v723 = vpop.f32.mrb[0].mxu0
        %v724 = vadd.f32 0.0, %v723
        %v725 = vpop.f32.mrb[0].mxu0
        %v726 = vadd.f32 0.0, %v725
        %727 = vmatprep.mubr.bf16.mxu0 0
        %728 = vmatmul.mubr.bf16.gmra.mrb[0].mxu0 %v657
        %v729 = vpop.f32.mrb[0].mxu0
        %v730 = vadd.f32 0.0, %v729
        %v731 = vpop.f32.mrb[0].mxu0
        %v732 = vadd.f32 0.0, %v731
        %v733 = vpop.f32.mrb[0].mxu0
        %v734 = vadd.f32 0.0, %v733
        %v735 = vpop.f32.mrb[0].mxu0
        %v736 = vadd.f32 0.0, %v735
        %737 = vmatprep.mubr.bf16.mxu0 0
        %738 = vmatmul.mubr.bf16.gmra.mrb[0].mxu0 %v660
        %v739 = vpop.f32.mrb[0].mxu0
        %v740 = vadd.f32 0.0, %v739
        %v741 = vpop.f32.mrb[0].mxu0
        %v742 = vadd.f32 0.0, %v741
        %v743 = vpop.f32.mrb[0].mxu0
        %v744 = vadd.f32 0.0, %v743
        %v745 = vpop.f32.mrb[0].mxu0
        %v746 = vadd.f32 0.0, %v745
        %747 = vmatprep.mubr.bf16.mxu0 0
        %748 = vmatmul.mubr.bf16.gmra.mrb[0].mxu0 %v663
        %v749 = vpop.f32.mrb[0].mxu0
        %v750 = vadd.f32 0.0, %v749
        %v751 = vpop.f32.mrb[0].mxu0
        %v752 = vadd.f32 0.0, %v751
        %v753 = vpop.f32.mrb[0].mxu0
        %v754 = vadd.f32 0.0, %v753
        %v755 = vpop.f32.mrb[0].mxu0
        %v756 = vadd.f32 0.0, %v755
        %757 = vdwg.mxu0
        %v766 = vunpack.c.l.b16 %v502
        %v767 = vunpack.c.h.b16 %v502
        %v768 = vunpack.c.l.b16 %v503
        %v769 = vunpack.c.h.b16 %v503
        %v770 = vunpack.c.l.b16 %v504
        %v771 = vunpack.c.h.b16 %v504
        %v772 = vunpack.c.l.b16 %v505
        %v773 = vunpack.c.h.b16 %v505
        %v774 = vunpack.c.l.b16 %v506
        %v775 = vunpack.c.h.b16 %v506
        %v776 = vunpack.c.l.b16 %v507
        %v777 = vunpack.c.h.b16 %v507
        %v778 = vunpack.c.l.b16 %v508
        %v779 = vunpack.c.h.b16 %v508
        %v780 = vunpack.c.l.b16 %v509
        %v781 = vunpack.c.h.b16 %v509
        %v782 = vpack.c.b16 %v768, %v766
        %v783 = vpack.c.b16 %v769, %v767
        %v784 = vpack.c.b16 %v772, %v770
        %v785 = vpack.c.b16 %v773, %v771
        %v786 = vpack.c.b16 %v776, %v774
        %v787 = vpack.c.b16 %v777, %v775
        %v788 = vpack.c.b16 %v780, %v778
        %v789 = vpack.c.b16 %v781, %v779
        %v798 = vsel %vm646, %v546, 0
        %v800 = vsel %vm646, %v547, 0
        %v802 = vsel %vm646, %v548, 0
        %v804 = vsel %vm646, %v549, 0
        %v806 = vsel %vm646, %v550, 0
        %v808 = vsel %vm646, %v551, 0
        %810 = vmatprep.subr.bf16.mxu0 %v783
        %811 = vmatpush1.bf16.msra.mxu0 %v782
        %812 = vmatprep.subr.bf16.mxu0 %v785
        %813 = vmatpush1.bf16.msra.mxu0 %v784
        %814 = vmatprep.subr.bf16.mxu0 %v787
        %815 = vmatpush1.bf16.msra.mxu0 %v786
        %816 = vmatprep.subr.bf16.mxu0 %v789
        %817 = vmatpush1.bf16.msra.mxu0 %v788
        %818 = vmatprep.subr.bf16.mxu0 0
        %819 = vmatpush1.bf16.msra.mxu0 0
        %820 = vmatprep.subr.bf16.mxu0 0
        %821 = vmatpush1.bf16.msra.mxu0 0
        %822 = vmatprep.subr.bf16.mxu0 0
        %823 = vmatpush1.bf16.msra.mxu0 0
        %824 = vmatprep.subr.bf16.mxu0 0
        %825 = vmatpush1.bf16.msra.mxu0 0
        %826 = vmatprep.subr.bf16.mxu0 0
        %827 = vmatpush1.bf16.msra.mxu0 0
        %828 = vmatprep.subr.bf16.mxu0 0
        %829 = vmatpush1.bf16.msra.mxu0 0
        %830 = vmatprep.subr.bf16.mxu0 0
        %831 = vmatpush1.bf16.msra.mxu0 0
        %832 = vmatprep.subr.bf16.mxu0 0
        %833 = vmatpush1.bf16.msra.mxu0 0
        %834 = vmatprep.subr.bf16.mxu0 0
        %835 = vmatpush1.bf16.msra.mxu0 0
        %836 = vmatprep.subr.bf16.mxu0 0
        %837 = vmatpush1.bf16.msra.mxu0 0
        %838 = vmatprep.subr.bf16.mxu0 0
        %839 = vmatpush1.bf16.msra.mxu0 0
        %840 = vmatprep.subr.bf16.mxu0 0
        %841 = vmatpush1.bf16.msra.mxu0 0
        %842 = vmatprep.mubr.bf16.mxu0 0
        %843 = vmatmul.mubr.bf16.gmra.mrb[0].mxu0 %v798
        %v844 = vpop.f32.mrb[0].mxu0
        %v845 = vadd.f32 %v700, %v844
        %v846 = vpop.f32.mrb[0].mxu0
        %v847 = vadd.f32 %v702, %v846
        %v848 = vpop.f32.mrb[0].mxu0
        %v849 = vadd.f32 %v704, %v848
        %v850 = vpop.f32.mrb[0].mxu0
        %v851 = vadd.f32 %v706, %v850
        %852 = vmatprep.mubr.bf16.mxu0 0
        %853 = vmatmul.mubr.bf16.gmra.mrb[0].mxu0 %v800
        %v854 = vpop.f32.mrb[0].mxu0
        %v855 = vadd.f32 %v710, %v854
        %v856 = vpop.f32.mrb[0].mxu0
        %v857 = vadd.f32 %v712, %v856
        %v858 = vpop.f32.mrb[0].mxu0
        %v859 = vadd.f32 %v714, %v858
        %v860 = vpop.f32.mrb[0].mxu0
        %v861 = vadd.f32 %v716, %v860
        %862 = vmatprep.mubr.bf16.mxu0 0
        %863 = vmatmul.mubr.bf16.gmra.mrb[0].mxu0 %v802
        %v864 = vpop.f32.mrb[0].mxu0
        %v865 = vadd.f32 %v720, %v864
        %v866 = vpop.f32.mrb[0].mxu0
        %v867 = vadd.f32 %v722, %v866
        %v868 = vpop.f32.mrb[0].mxu0
        %v869 = vadd.f32 %v724, %v868
        %v870 = vpop.f32.mrb[0].mxu0
        %v871 = vadd.f32 %v726, %v870
        %872 = vmatprep.mubr.bf16.mxu0 0
        %873 = vmatmul.mubr.bf16.gmra.mrb[0].mxu0 %v804
        %v874 = vpop.f32.mrb[0].mxu0
        %v875 = vadd.f32 %v730, %v874
        %v876 = vpop.f32.mrb[0].mxu0
        %v877 = vadd.f32 %v732, %v876
        %v878 = vpop.f32.mrb[0].mxu0
        %v879 = vadd.f32 %v734, %v878
        %v880 = vpop.f32.mrb[0].mxu0
        %v881 = vadd.f32 %v736, %v880
        %882 = vmatprep.mubr.bf16.mxu0 0
        %883 = vmatmul.mubr.bf16.gmra.mrb[0].mxu0 %v806
        %v884 = vpop.f32.mrb[0].mxu0
        %v885 = vadd.f32 %v740, %v884
        %v886 = vpop.f32.mrb[0].mxu0
        %v887 = vadd.f32 %v742, %v886
        %v888 = vpop.f32.mrb[0].mxu0
        %v889 = vadd.f32 %v744, %v888
        %v890 = vpop.f32.mrb[0].mxu0
        %v891 = vadd.f32 %v746, %v890
        %892 = vmatprep.mubr.bf16.mxu0 0
        %893 = vmatmul.mubr.bf16.gmra.mrb[0].mxu0 %v808
        %v894 = vpop.f32.mrb[0].mxu0
        %v895 = vadd.f32 %v750, %v894
        %v896 = vpop.f32.mrb[0].mxu0
        %v897 = vadd.f32 %v752, %v896
        %v898 = vpop.f32.mrb[0].mxu0
        %v899 = vadd.f32 %v754, %v898
        %v900 = vpop.f32.mrb[0].mxu0
        %v901 = vadd.f32 %v756, %v900
        %902 = vdwg.mxu0
        %v903 = vld [vmem:[#allocation2] sm:$0xe]
        %s904 = scalar_lea.vmem %s328, 128 [#allocation3]
        %v905 = vld [vmem:[%s904] sm:$0xff]
        %v906 = vld [vmem:[%s904 + $0x8] sm:$0xff]
        %v907 = vld [vmem:[%s904 + $0x10] sm:$0xff]
        %v908 = vld [vmem:[%s904 + $0x18] sm:$0xff]
        %v909 = vld [vmem:[%s904 + $0x20] sm:$0xff]
        %v910 = vld [vmem:[%s904 + $0x28] sm:$0xff]
        %v911 = vld [vmem:[%s904 + $0x30] sm:$0xff]
        %v912 = vld [vmem:[%s904 + $0x38] sm:$0xff]
        %v914 = vunpack.c.l.b16 %v903
        %v915 = vpack.c.b16 %v534, %v914
        %vm916 = vcmask 1046528
        %v917 = vrot.slane %v915, 1
        %v918 = vrot.slane %v547, 1
        %v919 = vsel %vm916, %v917, %v918
        %v920 = vrot.slane %v548, 1
        %v921 = vsel %vm916, %v918, %v920
        %v922 = vrot.slane %v549, 1
        %v923 = vsel %vm916, %v920, %v922
        %v924 = vrot.slane %v550, 1
        %v925 = vsel %vm916, %v922, %v924
        %v926 = vrot.slane %v551, 1
        %v927 = vsel %vm916, %v924, %v926
        %v928 = vrot.slane %v552, 1
        %v929 = vsel %vm916, %v926, %v928
        %v938 = vunpack.c.l.b16 %v905
        %v939 = vunpack.c.h.b16 %v905
        %v940 = vunpack.c.l.b16 %v906
        %v941 = vunpack.c.h.b16 %v906
        %v942 = vunpack.c.l.b16 %v907
        %v943 = vunpack.c.h.b16 %v907
        %v944 = vunpack.c.l.b16 %v908
        %v945 = vunpack.c.h.b16 %v908
        %v946 = vunpack.c.l.b16 %v909
        %v947 = vunpack.c.h.b16 %v909
        %v948 = vunpack.c.l.b16 %v910
        %v949 = vunpack.c.h.b16 %v910
        %v950 = vunpack.c.l.b16 %v911
        %v951 = vunpack.c.h.b16 %v911
        %v952 = vunpack.c.l.b16 %v912
        %v953 = vunpack.c.h.b16 %v912
        %v954 = vpack.c.b16 %v940, %v938
        %v955 = vpack.c.b16 %v941, %v939
        %v956 = vpack.c.b16 %v944, %v942
        %v957 = vpack.c.b16 %v945, %v943
        %v958 = vpack.c.b16 %v948, %v946
        %v959 = vpack.c.b16 %v949, %v947
        %v960 = vpack.c.b16 %v952, %v950
        %v961 = vpack.c.b16 %v953, %v951
        %v971 = vsel %vm646, %v919, 0
        %v974 = vsel %vm646, %v921, 0
        %v977 = vsel %vm646, %v923, 0
        %v980 = vsel %vm646, %v925, 0
        %v983 = vsel %vm646, %v927, 0
        %v986 = vsel %vm646, %v929, 0
        %988 = vmatprep.subr.bf16.mxu0 %v955
        %989 = vmatpush1.bf16.msra.mxu0 %v954
        %990 = vmatprep.subr.bf16.mxu0 %v957
        %991 = vmatpush1.bf16.msra.mxu0 %v956
        %992 = vmatprep.subr.bf16.mxu0 %v959
        %993 = vmatpush1.bf16.msra.mxu0 %v958
        %994 = vmatprep.subr.bf16.mxu0 %v961
        %995 = vmatpush1.bf16.msra.mxu0 %v960
        %996 = vmatprep.subr.bf16.mxu0 0
        %997 = vmatpush1.bf16.msra.mxu0 0
        %998 = vmatprep.subr.bf16.mxu0 0
        %999 = vmatpush1.bf16.msra.mxu0 0
        %1000 = vmatprep.subr.bf16.mxu0 0
        %1001 = vmatpush1.bf16.msra.mxu0 0
        %1002 = vmatprep.subr.bf16.mxu0 0
        %1003 = vmatpush1.bf16.msra.mxu0 0
        %1004 = vmatprep.subr.bf16.mxu0 0
        %1005 = vmatpush1.bf16.msra.mxu0 0
        %1006 = vmatprep.subr.bf16.mxu0 0
        %1007 = vmatpush1.bf16.msra.mxu0 0
        %1008 = vmatprep.subr.bf16.mxu0 0
        %1009 = vmatpush1.bf16.msra.mxu0 0
        %1010 = vmatprep.subr.bf16.mxu0 0
        %1011 = vmatpush1.bf16.msra.mxu0 0
        %1012 = vmatprep.subr.bf16.mxu0 0
        %1013 = vmatpush1.bf16.msra.mxu0 0
        %1014 = vmatprep.subr.bf16.mxu0 0
        %1015 = vmatpush1.bf16.msra.mxu0 0
        %1016 = vmatprep.subr.bf16.mxu0 0
        %1017 = vmatpush1.bf16.msra.mxu0 0
        %1018 = vmatprep.subr.bf16.mxu0 0
        %1019 = vmatpush1.bf16.msra.mxu0 0
        %1020 = vmatprep.mubr.bf16.mxu0 0
        %1021 = vmatmul.mubr.bf16.gmra.mrb[0].mxu0 %v971
        %v1022 = vpop.f32.mrb[0].mxu0
        %v1023 = vadd.f32 0.0, %v1022
        %v1024 = vpop.f32.mrb[0].mxu0
        %v1025 = vadd.f32 0.0, %v1024
        %v1026 = vpop.f32.mrb[0].mxu0
        %v1027 = vadd.f32 0.0, %v1026
        %v1028 = vpop.f32.mrb[0].mxu0
        %v1029 = vadd.f32 0.0, %v1028
        %1030 = vmatprep.mubr.bf16.mxu0 0
        %1031 = vmatmul.mubr.bf16.gmra.mrb[0].mxu0 %v974
        %v1032 = vpop.f32.mrb[0].mxu0
        %v1033 = vadd.f32 0.0, %v1032
        %v1034 = vpop.f32.mrb[0].mxu0
        %v1035 = vadd.f32 0.0, %v1034
        %v1036 = vpop.f32.mrb[0].mxu0
        %v1037 = vadd.f32 0.0, %v1036
        %v1038 = vpop.f32.mrb[0].mxu0
        %v1039 = vadd.f32 0.0, %v1038
        %1040 = vmatprep.mubr.bf16.mxu0 0
        %1041 = vmatmul.mubr.bf16.gmra.mrb[0].mxu0 %v977
        %v1042 = vpop.f32.mrb[0].mxu0
        %v1043 = vadd.f32 0.0, %v1042
        %v1044 = vpop.f32.mrb[0].mxu0
        %v1045 = vadd.f32 0.0, %v1044
        %v1046 = vpop.f32.mrb[0].mxu0
        %v1047 = vadd.f32 0.0, %v1046
        %v1048 = vpop.f32.mrb[0].mxu0
        %v1049 = vadd.f32 0.0, %v1048
        %1050 = vmatprep.mubr.bf16.mxu0 0
        %1051 = vmatmul.mubr.bf16.gmra.mrb[0].mxu0 %v980
        %v1052 = vpop.f32.mrb[0].mxu0
        %v1053 = vadd.f32 0.0, %v1052
        %v1054 = vpop.f32.mrb[0].mxu0
        %v1055 = vadd.f32 0.0, %v1054
        %v1056 = vpop.f32.mrb[0].mxu0
        %v1057 = vadd.f32 0.0, %v1056
        %v1058 = vpop.f32.mrb[0].mxu0
        %v1059 = vadd.f32 0.0, %v1058
        %1060 = vmatprep.mubr.bf16.mxu0 0
        %1061 = vmatmul.mubr.bf16.gmra.mrb[0].mxu0 %v983
        %v1062 = vpop.f32.mrb[0].mxu0
        %v1063 = vadd.f32 0.0, %v1062
        %v1064 = vpop.f32.mrb[0].mxu0
        %v1065 = vadd.f32 0.0, %v1064
        %v1066 = vpop.f32.mrb[0].mxu0
        %v1067 = vadd.f32 0.0, %v1066
        %v1068 = vpop.f32.mrb[0].mxu0
        %v1069 = vadd.f32 0.0, %v1068
        %1070 = vmatprep.mubr.bf16.mxu0 0
        %1071 = vmatmul.mubr.bf16.gmra.mrb[0].mxu0 %v986
        %v1072 = vpop.f32.mrb[0].mxu0
        %v1073 = vadd.f32 0.0, %v1072
        %v1074 = vpop.f32.mrb[0].mxu0
        %v1075 = vadd.f32 0.0, %v1074
        %v1076 = vpop.f32.mrb[0].mxu0
        %v1077 = vadd.f32 0.0, %v1076
        %v1078 = vpop.f32.mrb[0].mxu0
        %v1079 = vadd.f32 0.0, %v1078
        %1080 = vdwg.mxu0
        %v1081 = vadd.f32 %v845, %v1023
        %v1082 = vadd.f32 %v847, %v1025
        %v1083 = vadd.f32 %v849, %v1027
        %v1084 = vadd.f32 %v851, %v1029
        %v1085 = vadd.f32 %v855, %v1033
        %v1086 = vadd.f32 %v857, %v1035
        %v1087 = vadd.f32 %v859, %v1037
        %v1088 = vadd.f32 %v861, %v1039
        %v1089 = vadd.f32 %v865, %v1043
        %v1090 = vadd.f32 %v867, %v1045
        %v1091 = vadd.f32 %v869, %v1047
        %v1092 = vadd.f32 %v871, %v1049
        %v1093 = vadd.f32 %v875, %v1053
        %v1094 = vadd.f32 %v877, %v1055
        %v1095 = vadd.f32 %v879, %v1057
        %v1096 = vadd.f32 %v881, %v1059
        %v1097 = vadd.f32 %v885, %v1063
        %v1098 = vadd.f32 %v887, %v1065
        %v1099 = vadd.f32 %v889, %v1067
        %v1100 = vadd.f32 %v891, %v1069
        %v1101 = vadd.f32 %v895, %v1073
        %v1102 = vadd.f32 %v897, %v1075
        %v1103 = vadd.f32 %v899, %v1077
        %v1104 = vadd.f32 %v901, %v1079
        %v1105 = vld [vmem:[#allocation2 + $0xc] sm:$0xf]
        %v1106 = vld [vmem:[#allocation2 + $0x10] sm:$0xf]
        %v1107 = vld [vmem:[#allocation2 + $0x14] sm:$0xf]
        %v1108 = vld [vmem:[#allocation2 + $0x18] sm:$0xf]
        %v1109 = vld [vmem:[#allocation2 + $0x1c] sm:$0xf]
        %v1110 = vld [vmem:[#allocation2 + $0x20] sm:$0xf]
        %v1111 = vld [vmem:[#allocation2 + $0x24] sm:$0xf]
        %v1112 = vld [vmem:[#allocation2 + $0x28] sm:$0xf]
        %v1113 = vld [vmem:[#allocation2 + $0x2c] sm:$0xf]
        %v1114 = vld [vmem:[#allocation2 + $0x30] sm:$0xf]
        %v1115 = vld [vmem:[#allocation2 + $0x34] sm:$0xf]
        %v1116 = vld [vmem:[#allocation2 + $0x38] sm:$0xf]
        %s1117 = scalar_lea.vmem %s328, 192 [#allocation3]
        %v1118 = vld [vmem:[%s1117] sm:$0xff]
        %v1119 = vld [vmem:[%s1117 + $0x8] sm:$0xff]
        %v1120 = vld [vmem:[%s1117 + $0x10] sm:$0xff]
        %v1121 = vld [vmem:[%s1117 + $0x18] sm:$0xff]
        %v1122 = vld [vmem:[%s1117 + $0x20] sm:$0xff]
        %v1123 = vld [vmem:[%s1117 + $0x28] sm:$0xff]
        %v1124 = vld [vmem:[%s1117 + $0x30] sm:$0xff]
        %v1125 = vld [vmem:[%s1117 + $0x38] sm:$0xff]
        %v1138 = vunpack.c.l.b16 %v1105
        %v1139 = vunpack.c.l.b16 %v1106
        %v1140 = vunpack.c.l.b16 %v1107
        %v1141 = vunpack.c.l.b16 %v1108
        %v1142 = vunpack.c.l.b16 %v1109
        %v1143 = vunpack.c.l.b16 %v1110
        %v1144 = vunpack.c.l.b16 %v1111
        %v1145 = vunpack.c.l.b16 %v1112
        %v1146 = vunpack.c.l.b16 %v1113
        %v1147 = vunpack.c.l.b16 %v1114
        %v1148 = vunpack.c.l.b16 %v1115
        %v1149 = vunpack.c.l.b16 %v1116
        %v1150 = vpack.c.b16 %v1139, %v1138
        %v1151 = vpack.c.b16 %v1141, %v1140
        %v1152 = vpack.c.b16 %v1143, %v1142
        %v1153 = vpack.c.b16 %v1145, %v1144
        %v1154 = vpack.c.b16 %v1147, %v1146
        %v1155 = vpack.c.b16 %v1149, %v1148
        %v1164 = vunpack.c.l.b16 %v1118
        %v1165 = vunpack.c.h.b16 %v1118
        %v1166 = vunpack.c.l.b16 %v1119
        %v1167 = vunpack.c.h.b16 %v1119
        %v1168 = vunpack.c.l.b16 %v1120
        %v1169 = vunpack.c.h.b16 %v1120
        %v1170 = vunpack.c.l.b16 %v1121
        %v1171 = vunpack.c.h.b16 %v1121
        %v1172 = vunpack.c.l.b16 %v1122
        %v1173 = vunpack.c.h.b16 %v1122
        %v1174 = vunpack.c.l.b16 %v1123
        %v1175 = vunpack.c.h.b16 %v1123
        %v1176 = vunpack.c.l.b16 %v1124
        %v1177 = vunpack.c.h.b16 %v1124
        %v1178 = vunpack.c.l.b16 %v1125
        %v1179 = vunpack.c.h.b16 %v1125
        %v1180 = vpack.c.b16 %v1166, %v1164
        %v1181 = vpack.c.b16 %v1167, %v1165
        %v1182 = vpack.c.b16 %v1170, %v1168
        %v1183 = vpack.c.b16 %v1171, %v1169
        %v1184 = vpack.c.b16 %v1174, %v1172
        %v1185 = vpack.c.b16 %v1175, %v1173
        %v1186 = vpack.c.b16 %v1178, %v1176
        %v1187 = vpack.c.b16 %v1179, %v1177
        %v1197 = vsel %vm646, %v1150, 0
        %v1200 = vsel %vm646, %v1151, 0
        %v1203 = vsel %vm646, %v1152, 0
        %v1206 = vsel %vm646, %v1153, 0
        %v1209 = vsel %vm646, %v1154, 0
        %v1212 = vsel %vm646, %v1155, 0
        %1214 = vmatprep.subr.bf16.mxu0 %v1181
        %1215 = vmatpush1.bf16.msra.mxu0 %v1180
        %1216 = vmatprep.subr.bf16.mxu0 %v1183
        %1217 = vmatpush1.bf16.msra.mxu0 %v1182
        %1218 = vmatprep.subr.bf16.mxu0 %v1185
        %1219 = vmatpush1.bf16.msra.mxu0 %v1184
        %1220 = vmatprep.subr.bf16.mxu0 %v1187
        %1221 = vmatpush1.bf16.msra.mxu0 %v1186
        %1222 = vmatprep.subr.bf16.mxu0 0
        %1223 = vmatpush1.bf16.msra.mxu0 0
        %1224 = vmatprep.subr.bf16.mxu0 0
        %1225 = vmatpush1.bf16.msra.mxu0 0
        %1226 = vmatprep.subr.bf16.mxu0 0
        %1227 = vmatpush1.bf16.msra.mxu0 0
        %1228 = vmatprep.subr.bf16.mxu0 0
        %1229 = vmatpush1.bf16.msra.mxu0 0
        %1230 = vmatprep.subr.bf16.mxu0 0
        %1231 = vmatpush1.bf16.msra.mxu0 0
        %1232 = vmatprep.subr.bf16.mxu0 0
        %1233 = vmatpush1.bf16.msra.mxu0 0
        %1234 = vmatprep.subr.bf16.mxu0 0
        %1235 = vmatpush1.bf16.msra.mxu0 0
        %1236 = vmatprep.subr.bf16.mxu0 0
        %1237 = vmatpush1.bf16.msra.mxu0 0
        %1238 = vmatprep.subr.bf16.mxu0 0
        %1239 = vmatpush1.bf16.msra.mxu0 0
        %1240 = vmatprep.subr.bf16.mxu0 0
        %1241 = vmatpush1.bf16.msra.mxu0 0
        %1242 = vmatprep.subr.bf16.mxu0 0
        %1243 = vmatpush1.bf16.msra.mxu0 0
        %1244 = vmatprep.subr.bf16.mxu0 0
        %1245 = vmatpush1.bf16.msra.mxu0 0
        %1246 = vmatprep.mubr.bf16.mxu0 0
        %1247 = vmatmul.mubr.bf16.gmra.mrb[0].mxu0 %v1197
        %v1248 = vpop.f32.mrb[0].mxu0
        %v1249 = vadd.f32 0.0, %v1248
        %v1250 = vpop.f32.mrb[0].mxu0
        %v1251 = vadd.f32 0.0, %v1250
        %v1252 = vpop.f32.mrb[0].mxu0
        %v1253 = vadd.f32 0.0, %v1252
        %v1254 = vpop.f32.mrb[0].mxu0
        %v1255 = vadd.f32 0.0, %v1254
        %1256 = vmatprep.mubr.bf16.mxu0 0
        %1257 = vmatmul.mubr.bf16.gmra.mrb[0].mxu0 %v1200
        %v1258 = vpop.f32.mrb[0].mxu0
        %v1259 = vadd.f32 0.0, %v1258
        %v1260 = vpop.f32.mrb[0].mxu0
        %v1261 = vadd.f32 0.0, %v1260
        %v1262 = vpop.f32.mrb[0].mxu0
        %v1263 = vadd.f32 0.0, %v1262
        %v1264 = vpop.f32.mrb[0].mxu0
        %v1265 = vadd.f32 0.0, %v1264
        %1266 = vmatprep.mubr.bf16.mxu0 0
        %1267 = vmatmul.mubr.bf16.gmra.mrb[0].mxu0 %v1203
        %v1268 = vpop.f32.mrb[0].mxu0
        %v1269 = vadd.f32 0.0, %v1268
        %v1270 = vpop.f32.mrb[0].mxu0
        %v1271 = vadd.f32 0.0, %v1270
        %v1272 = vpop.f32.mrb[0].mxu0
        %v1273 = vadd.f32 0.0, %v1272
        %v1274 = vpop.f32.mrb[0].mxu0
        %v1275 = vadd.f32 0.0, %v1274
        %1276 = vmatprep.mubr.bf16.mxu0 0
        %1277 = vmatmul.mubr.bf16.gmra.mrb[0].mxu0 %v1206
        %v1278 = vpop.f32.mrb[0].mxu0
        %v1279 = vadd.f32 0.0, %v1278
        %v1280 = vpop.f32.mrb[0].mxu0
        %v1281 = vadd.f32 0.0, %v1280
        %v1282 = vpop.f32.mrb[0].mxu0
        %v1283 = vadd.f32 0.0, %v1282
        %v1284 = vpop.f32.mrb[0].mxu0
        %v1285 = vadd.f32 0.0, %v1284
        %1286 = vmatprep.mubr.bf16.mxu0 0
        %1287 = vmatmul.mubr.bf16.gmra.mrb[0].mxu0 %v1209
        %v1288 = vpop.f32.mrb[0].mxu0
        %v1289 = vadd.f32 0.0, %v1288
        %v1290 = vpop.f32.mrb[0].mxu0
        %v1291 = vadd.f32 0.0, %v1290
        %v1292 = vpop.f32.mrb[0].mxu0
        %v1293 = vadd.f32 0.0, %v1292
        %v1294 = vpop.f32.mrb[0].mxu0
        %v1295 = vadd.f32 0.0, %v1294
        %1296 = vmatprep.mubr.bf16.mxu0 0
        %1297 = vmatmul.mubr.bf16.gmra.mrb[0].mxu0 %v1212
        %v1298 = vpop.f32.mrb[0].mxu0
        %v1299 = vadd.f32 0.0, %v1298
        %v1300 = vpop.f32.mrb[0].mxu0
        %v1301 = vadd.f32 0.0, %v1300
        %v1302 = vpop.f32.mrb[0].mxu0
        %v1303 = vadd.f32 0.0, %v1302
        %v1304 = vpop.f32.mrb[0].mxu0
        %v1305 = vadd.f32 0.0, %v1304
        %1306 = vdwg.mxu0
        %v1307 = vadd.f32 %v1081, %v1249
        %v1308 = vadd.f32 %v1082, %v1251
        %v1309 = vadd.f32 %v1083, %v1253
        %v1310 = vadd.f32 %v1084, %v1255
        %v1311 = vadd.f32 %v1085, %v1259
        %v1312 = vadd.f32 %v1086, %v1261
        %v1313 = vadd.f32 %v1087, %v1263
        %v1314 = vadd.f32 %v1088, %v1265
        %v1315 = vadd.f32 %v1089, %v1269
        %v1316 = vadd.f32 %v1090, %v1271
        %v1317 = vadd.f32 %v1091, %v1273
        %v1318 = vadd.f32 %v1092, %v1275
        %v1319 = vadd.f32 %v1093, %v1279
        %v1320 = vadd.f32 %v1094, %v1281
        %v1321 = vadd.f32 %v1095, %v1283
        %v1322 = vadd.f32 %v1096, %v1285
        %v1323 = vadd.f32 %v1097, %v1289
        %v1324 = vadd.f32 %v1098, %v1291
        %v1325 = vadd.f32 %v1099, %v1293
        %v1326 = vadd.f32 %v1100, %v1295
        %v1327 = vadd.f32 %v1101, %v1299
        %v1328 = vadd.f32 %v1102, %v1301
        %v1329 = vadd.f32 %v1103, %v1303
        %v1330 = vadd.f32 %v1104, %v1305
        %v1331 = vld [vmem:[#allocation2 + $0xc] sm:$0xf]
        %v1332 = vld [vmem:[#allocation2 + $0x10] sm:$0xf]
        %v1333 = vld [vmem:[#allocation2 + $0x14] sm:$0xf]
        %v1334 = vld [vmem:[#allocation2 + $0x18] sm:$0xf]
        %v1335 = vld [vmem:[#allocation2 + $0x1c] sm:$0xf]
        %v1336 = vld [vmem:[#allocation2 + $0x20] sm:$0xf]
        %v1337 = vld [vmem:[#allocation2 + $0x24] sm:$0xf]
        %v1338 = vld [vmem:[#allocation2 + $0x28] sm:$0xf]
        %v1339 = vld [vmem:[#allocation2 + $0x2c] sm:$0xf]
        %v1340 = vld [vmem:[#allocation2 + $0x30] sm:$0xf]
        %v1341 = vld [vmem:[#allocation2 + $0x34] sm:$0xf]
        %v1342 = vld [vmem:[#allocation2 + $0x38] sm:$0xf]
        %v1343 = vld [vmem:[#allocation2 + $0x3c] sm:$0x1]
        %s1344 = scalar_lea.vmem %s328, 256 [#allocation3]
        %v1345 = vld [vmem:[%s1344] sm:$0xff]
        %v1346 = vld [vmem:[%s1344 + $0x8] sm:$0xff]
        %v1347 = vld [vmem:[%s1344 + $0x10] sm:$0xff]
        %v1348 = vld [vmem:[%s1344 + $0x18] sm:$0xff]
        %v1349 = vld [vmem:[%s1344 + $0x20] sm:$0xff]
        %v1350 = vld [vmem:[%s1344 + $0x28] sm:$0xff]
        %v1351 = vld [vmem:[%s1344 + $0x30] sm:$0xff]
        %v1352 = vld [vmem:[%s1344 + $0x38] sm:$0xff]
        %v1366 = vunpack.c.l.b16 %v1331
        %v1367 = vunpack.c.l.b16 %v1332
        %v1368 = vunpack.c.l.b16 %v1333
        %v1369 = vunpack.c.l.b16 %v1334
        %v1370 = vunpack.c.l.b16 %v1335
        %v1371 = vunpack.c.l.b16 %v1336
        %v1372 = vunpack.c.l.b16 %v1337
        %v1373 = vunpack.c.l.b16 %v1338
        %v1374 = vunpack.c.l.b16 %v1339
        %v1375 = vunpack.c.l.b16 %v1340
        %v1376 = vunpack.c.l.b16 %v1341
        %v1377 = vunpack.c.l.b16 %v1342
        %v1378 = vunpack.c.l.b16 %v1343
        %v1379 = vpack.c.b16 %v1367, %v1366
        %v1380 = vpack.c.b16 %v1369, %v1368
        %v1381 = vpack.c.b16 %v1371, %v1370
        %v1382 = vpack.c.b16 %v1373, %v1372
        %v1383 = vpack.c.b16 %v1375, %v1374
        %v1384 = vpack.c.b16 %v1377, %v1376
        %v1385 = vpack.c.b16 %v1378, %v1378
        %v1387 = vshrl.u32 %v1379, 16
        %v1389 = vshll.u32 %v1379, 16
        %v1391 = vrot.slane %v1389, 1
        %v1392 = vor.u32 %v1387, %v1391
        %v1394 = vshll.u32 %v1380, 16
        %v1396 = vrot.slane %v1394, 1
        %v1397 = vsel %vm553, %v1392, %v1396
        %v1398 = vshrl.u32 %v1380, 16
        %v1400 = vor.u32 %v1398, %v1396
        %v1402 = vshll.u32 %v1381, 16
        %v1404 = vrot.slane %v1402, 1
        %v1405 = vsel %vm553, %v1400, %v1404
        %v1406 = vshrl.u32 %v1381, 16
        %v1408 = vor.u32 %v1406, %v1404
        %v1410 = vshll.u32 %v1382, 16
        %v1412 = vrot.slane %v1410, 1
        %v1413 = vsel %vm553, %v1408, %v1412
        %v1414 = vshrl.u32 %v1382, 16
        %v1416 = vor.u32 %v1414, %v1412
        %v1418 = vshll.u32 %v1383, 16
        %v1420 = vrot.slane %v1418, 1
        %v1421 = vsel %vm553, %v1416, %v1420
        %v1422 = vshrl.u32 %v1383, 16
        %v1424 = vor.u32 %v1422, %v1420
        %v1426 = vshll.u32 %v1384, 16
        %v1428 = vrot.slane %v1426, 1
        %v1429 = vsel %vm553, %v1424, %v1428
        %v1430 = vshrl.u32 %v1384, 16
        %v1432 = vor.u32 %v1430, %v1428
        %v1434 = vshll.u32 %v1385, 16
        %v1436 = vrot.slane %v1434, 1
        %v1437 = vsel %vm553, %v1432, %v1436
        %v1446 = vunpack.c.l.b16 %v1345
        %v1447 = vunpack.c.h.b16 %v1345
        %v1448 = vunpack.c.l.b16 %v1346
        %v1449 = vunpack.c.h.b16 %v1346
        %v1450 = vunpack.c.l.b16 %v1347
        %v1451 = vunpack.c.h.b16 %v1347
        %v1452 = vunpack.c.l.b16 %v1348
        %v1453 = vunpack.c.h.b16 %v1348
        %v1454 = vunpack.c.l.b16 %v1349
        %v1455 = vunpack.c.h.b16 %v1349
        %v1456 = vunpack.c.l.b16 %v1350
        %v1457 = vunpack.c.h.b16 %v1350
        %v1458 = vunpack.c.l.b16 %v1351
        %v1459 = vunpack.c.h.b16 %v1351
        %v1460 = vunpack.c.l.b16 %v1352
        %v1461 = vunpack.c.h.b16 %v1352
        %v1462 = vpack.c.b16 %v1448, %v1446
        %v1463 = vpack.c.b16 %v1449, %v1447
        %v1464 = vpack.c.b16 %v1452, %v1450
        %v1465 = vpack.c.b16 %v1453, %v1451
        %v1466 = vpack.c.b16 %v1456, %v1454
        %v1467 = vpack.c.b16 %v1457, %v1455
        %v1468 = vpack.c.b16 %v1460, %v1458
        %v1469 = vpack.c.b16 %v1461, %v1459
        %v1479 = vsel %vm646, %v1397, 0
        %v1482 = vsel %vm646, %v1405, 0
        %v1485 = vsel %vm646, %v1413, 0
        %v1488 = vsel %vm646, %v1421, 0
        %v1491 = vsel %vm646, %v1429, 0
        %v1494 = vsel %vm646, %v1437, 0
        %1496 = vmatprep.subr.bf16.mxu0 %v1463
        %1497 = vmatpush1.bf16.msra.mxu0 %v1462
        %1498 = vmatprep.subr.bf16.mxu0 %v1465
        %1499 = vmatpush1.bf16.msra.mxu0 %v1464
        %1500 = vmatprep.subr.bf16.mxu0 %v1467
        %1501 = vmatpush1.bf16.msra.mxu0 %v1466
        %1502 = vmatprep.subr.bf16.mxu0 %v1469
        %1503 = vmatpush1.bf16.msra.mxu0 %v1468
        %1504 = vmatprep.subr.bf16.mxu0 0
        %1505 = vmatpush1.bf16.msra.mxu0 0
        %1506 = vmatprep.subr.bf16.mxu0 0
        %1507 = vmatpush1.bf16.msra.mxu0 0
        %1508 = vmatprep.subr.bf16.mxu0 0
        %1509 = vmatpush1.bf16.msra.mxu0 0
        %1510 = vmatprep.subr.bf16.mxu0 0
        %1511 = vmatpush1.bf16.msra.mxu0 0
        %1512 = vmatprep.subr.bf16.mxu0 0
        %1513 = vmatpush1.bf16.msra.mxu0 0
        %1514 = vmatprep.subr.bf16.mxu0 0
        %1515 = vmatpush1.bf16.msra.mxu0 0
        %1516 = vmatprep.subr.bf16.mxu0 0
        %1517 = vmatpush1.bf16.msra.mxu0 0
        %1518 = vmatprep.subr.bf16.mxu0 0
        %1519 = vmatpush1.bf16.msra.mxu0 0
        %1520 = vmatprep.subr.bf16.mxu0 0
        %1521 = vmatpush1.bf16.msra.mxu0 0
        %1522 = vmatprep.subr.bf16.mxu0 0
        %1523 = vmatpush1.bf16.msra.mxu0 0
        %1524 = vmatprep.subr.bf16.mxu0 0
        %1525 = vmatpush1.bf16.msra.mxu0 0
        %1526 = vmatprep.subr.bf16.mxu0 0
        %1527 = vmatpush1.bf16.msra.mxu0 0
        %1528 = vmatprep.mubr.bf16.mxu0 0
        %1529 = vmatmul.mubr.bf16.gmra.mrb[0].mxu0 %v1479
        %v1530 = vpop.f32.mrb[0].mxu0
        %v1531 = vadd.f32 0.0, %v1530
        %v1532 = vpop.f32.mrb[0].mxu0
        %v1533 = vadd.f32 0.0, %v1532
        %v1534 = vpop.f32.mrb[0].mxu0
        %v1535 = vadd.f32 0.0, %v1534
        %v1536 = vpop.f32.mrb[0].mxu0
        %v1537 = vadd.f32 0.0, %v1536
        %1538 = vmatprep.mubr.bf16.mxu0 0
        %1539 = vmatmul.mubr.bf16.gmra.mrb[0].mxu0 %v1482
        %v1540 = vpop.f32.mrb[0].mxu0
        %v1541 = vadd.f32 0.0, %v1540
        %v1542 = vpop.f32.mrb[0].mxu0
        %v1543 = vadd.f32 0.0, %v1542
        %v1544 = vpop.f32.mrb[0].mxu0
        %v1545 = vadd.f32 0.0, %v1544
        %v1546 = vpop.f32.mrb[0].mxu0
        %v1547 = vadd.f32 0.0, %v1546
        %1548 = vmatprep.mubr.bf16.mxu0 0
        %1549 = vmatmul.mubr.bf16.gmra.mrb[0].mxu0 %v1485
        %v1550 = vpop.f32.mrb[0].mxu0
        %v1551 = vadd.f32 0.0, %v1550
        %v1552 = vpop.f32.mrb[0].mxu0
        %v1553 = vadd.f32 0.0, %v1552
        %v1554 = vpop.f32.mrb[0].mxu0
        %v1555 = vadd.f32 0.0, %v1554
        %v1556 = vpop.f32.mrb[0].mxu0
        %v1557 = vadd.f32 0.0, %v1556
        %1558 = vmatprep.mubr.bf16.mxu0 0
        %1559 = vmatmul.mubr.bf16.gmra.mrb[0].mxu0 %v1488
        %v1560 = vpop.f32.mrb[0].mxu0
        %v1561 = vadd.f32 0.0, %v1560
        %v1562 = vpop.f32.mrb[0].mxu0
        %v1563 = vadd.f32 0.0, %v1562
        %v1564 = vpop.f32.mrb[0].mxu0
        %v1565 = vadd.f32 0.0, %v1564
        %v1566 = vpop.f32.mrb[0].mxu0
        %v1567 = vadd.f32 0.0, %v1566
        %1568 = vmatprep.mubr.bf16.mxu0 0
        %1569 = vmatmul.mubr.bf16.gmra.mrb[0].mxu0 %v1491
        %v1570 = vpop.f32.mrb[0].mxu0
        %v1571 = vadd.f32 0.0, %v1570
        %v1572 = vpop.f32.mrb[0].mxu0
        %v1573 = vadd.f32 0.0, %v1572
        %v1574 = vpop.f32.mrb[0].mxu0
        %v1575 = vadd.f32 0.0, %v1574
        %v1576 = vpop.f32.mrb[0].mxu0
        %v1577 = vadd.f32 0.0, %v1576
        %1578 = vmatprep.mubr.bf16.mxu0 0
        %1579 = vmatmul.mubr.bf16.gmra.mrb[0].mxu0 %v1494
        %v1580 = vpop.f32.mrb[0].mxu0
        %v1581 = vadd.f32 0.0, %v1580
        %v1582 = vpop.f32.mrb[0].mxu0
        %v1583 = vadd.f32 0.0, %v1582
        %v1584 = vpop.f32.mrb[0].mxu0
        %v1585 = vadd.f32 0.0, %v1584
        %v1586 = vpop.f32.mrb[0].mxu0
        %v1587 = vadd.f32 0.0, %v1586
        %1588 = vdwg.mxu0
        %v1589 = vadd.f32 %v1307, %v1531
        %v1590 = vadd.f32 %v1308, %v1533
        %v1591 = vadd.f32 %v1309, %v1535
        %v1592 = vadd.f32 %v1310, %v1537
        %v1593 = vadd.f32 %v1311, %v1541
        %v1594 = vadd.f32 %v1312, %v1543
        %v1595 = vadd.f32 %v1313, %v1545
        %v1596 = vadd.f32 %v1314, %v1547
        %v1597 = vadd.f32 %v1315, %v1551
        %v1598 = vadd.f32 %v1316, %v1553
        %v1599 = vadd.f32 %v1317, %v1555
        %v1600 = vadd.f32 %v1318, %v1557
        %v1601 = vadd.f32 %v1319, %v1561
        %v1602 = vadd.f32 %v1320, %v1563
        %v1603 = vadd.f32 %v1321, %v1565
        %v1604 = vadd.f32 %v1322, %v1567
        %v1605 = vadd.f32 %v1323, %v1571
        %v1606 = vadd.f32 %v1324, %v1573
        %v1607 = vadd.f32 %v1325, %v1575
        %v1608 = vadd.f32 %v1326, %v1577
        %v1609 = vadd.f32 %v1327, %v1581
        %v1610 = vadd.f32 %v1328, %v1583
        %v1611 = vadd.f32 %v1329, %v1585
        %v1612 = vadd.f32 %v1330, %v1587
        %v1613 = vld [vmem:[#allocation2 + $0xc] sm:$0xe]
        %s1614 = scalar_lea.vmem %s328, 320 [#allocation3]
        %v1615 = vld [vmem:[%s1614] sm:$0xff]
        %v1616 = vld [vmem:[%s1614 + $0x8] sm:$0xff]
        %v1617 = vld [vmem:[%s1614 + $0x10] sm:$0xff]
        %v1618 = vld [vmem:[%s1614 + $0x18] sm:$0xff]
        %v1619 = vld [vmem:[%s1614 + $0x20] sm:$0xff]
        %v1620 = vld [vmem:[%s1614 + $0x28] sm:$0xff]
        %v1621 = vld [vmem:[%s1614 + $0x30] sm:$0xff]
        %v1622 = vld [vmem:[%s1614 + $0x38] sm:$0xff]
        %v1624 = vunpack.c.l.b16 %v1613
        %v1625 = vpack.c.b16 %v1367, %v1624
        %v1626 = vrot.slane %v1625, 1
        %v1627 = vrot.slane %v1380, 1
        %v1628 = vsel %vm916, %v1626, %v1627
        %v1629 = vrot.slane %v1381, 1
        %v1630 = vsel %vm916, %v1627, %v1629
        %v1631 = vrot.slane %v1382, 1
        %v1632 = vsel %vm916, %v1629, %v1631
        %v1633 = vrot.slane %v1383, 1
        %v1634 = vsel %vm916, %v1631, %v1633
        %v1635 = vrot.slane %v1384, 1
        %v1636 = vsel %vm916, %v1633, %v1635
        %v1637 = vrot.slane %v1385, 1
        %v1638 = vsel %vm916, %v1635, %v1637
        %v1647 = vunpack.c.l.b16 %v1615
        %v1648 = vunpack.c.h.b16 %v1615
        %v1649 = vunpack.c.l.b16 %v1616
        %v1650 = vunpack.c.h.b16 %v1616
        %v1651 = vunpack.c.l.b16 %v1617
        %v1652 = vunpack.c.h.b16 %v1617
        %v1653 = vunpack.c.l.b16 %v1618
        %v1654 = vunpack.c.h.b16 %v1618
        %v1655 = vunpack.c.l.b16 %v1619
        %v1656 = vunpack.c.h.b16 %v1619
        %v1657 = vunpack.c.l.b16 %v1620
        %v1658 = vunpack.c.h.b16 %v1620
        %v1659 = vunpack.c.l.b16 %v1621
        %v1660 = vunpack.c.h.b16 %v1621
        %v1661 = vunpack.c.l.b16 %v1622
        %v1662 = vunpack.c.h.b16 %v1622
        %v1663 = vpack.c.b16 %v1649, %v1647
        %v1664 = vpack.c.b16 %v1650, %v1648
        %v1665 = vpack.c.b16 %v1653, %v1651
        %v1666 = vpack.c.b16 %v1654, %v1652
        %v1667 = vpack.c.b16 %v1657, %v1655
        %v1668 = vpack.c.b16 %v1658, %v1656
        %v1669 = vpack.c.b16 %v1661, %v1659
        %v1670 = vpack.c.b16 %v1662, %v1660
        %v1680 = vsel %vm646, %v1628, 0
        %v1683 = vsel %vm646, %v1630, 0
        %v1686 = vsel %vm646, %v1632, 0
        %v1689 = vsel %vm646, %v1634, 0
        %v1692 = vsel %vm646, %v1636, 0
        %v1695 = vsel %vm646, %v1638, 0
        %1697 = vmatprep.subr.bf16.mxu0 %v1664
        %1698 = vmatpush1.bf16.msra.mxu0 %v1663
        %1699 = vmatprep.subr.bf16.mxu0 %v1666
        %1700 = vmatpush1.bf16.msra.mxu0 %v1665
        %1701 = vmatprep.subr.bf16.mxu0 %v1668
        %1702 = vmatpush1.bf16.msra.mxu0 %v1667
        %1703 = vmatprep.subr.bf16.mxu0 %v1670
        %1704 = vmatpush1.bf16.msra.mxu0 %v1669
        %1705 = vmatprep.subr.bf16.mxu0 0
        %1706 = vmatpush1.bf16.msra.mxu0 0
        %1707 = vmatprep.subr.bf16.mxu0 0
        %1708 = vmatpush1.bf16.msra.mxu0 0
        %1709 = vmatprep.subr.bf16.mxu0 0
        %1710 = vmatpush1.bf16.msra.mxu0 0
        %1711 = vmatprep.subr.bf16.mxu0 0
        %1712 = vmatpush1.bf16.msra.mxu0 0
        %1713 = vmatprep.subr.bf16.mxu0 0
        %1714 = vmatpush1.bf16.msra.mxu0 0
        %1715 = vmatprep.subr.bf16.mxu0 0
        %1716 = vmatpush1.bf16.msra.mxu0 0
        %1717 = vmatprep.subr.bf16.mxu0 0
        %1718 = vmatpush1.bf16.msra.mxu0 0
        %1719 = vmatprep.subr.bf16.mxu0 0
        %1720 = vmatpush1.bf16.msra.mxu0 0
        %1721 = vmatprep.subr.bf16.mxu0 0
        %1722 = vmatpush1.bf16.msra.mxu0 0
        %1723 = vmatprep.subr.bf16.mxu0 0
        %1724 = vmatpush1.bf16.msra.mxu0 0
        %1725 = vmatprep.subr.bf16.mxu0 0
        %1726 = vmatpush1.bf16.msra.mxu0 0
        %1727 = vmatprep.subr.bf16.mxu0 0
        %1728 = vmatpush1.bf16.msra.mxu0 0
        %1729 = vmatprep.mubr.bf16.mxu0 0
        %1730 = vmatmul.mubr.bf16.gmra.mrb[0].mxu0 %v1680
        %v1731 = vpop.f32.mrb[0].mxu0
        %v1732 = vadd.f32 0.0, %v1731
        %v1733 = vpop.f32.mrb[0].mxu0
        %v1734 = vadd.f32 0.0, %v1733
        %v1735 = vpop.f32.mrb[0].mxu0
        %v1736 = vadd.f32 0.0, %v1735
        %v1737 = vpop.f32.mrb[0].mxu0
        %v1738 = vadd.f32 0.0, %v1737
        %1739 = vmatprep.mubr.bf16.mxu0 0
        %1740 = vmatmul.mubr.bf16.gmra.mrb[0].mxu0 %v1683
        %v1741 = vpop.f32.mrb[0].mxu0
        %v1742 = vadd.f32 0.0, %v1741
        %v1743 = vpop.f32.mrb[0].mxu0
        %v1744 = vadd.f32 0.0, %v1743
        %v1745 = vpop.f32.mrb[0].mxu0
        %v1746 = vadd.f32 0.0, %v1745
        %v1747 = vpop.f32.mrb[0].mxu0
        %v1748 = vadd.f32 0.0, %v1747
        %1749 = vmatprep.mubr.bf16.mxu0 0
        %1750 = vmatmul.mubr.bf16.gmra.mrb[0].mxu0 %v1686
        %v1751 = vpop.f32.mrb[0].mxu0
        %v1752 = vadd.f32 0.0, %v1751
        %v1753 = vpop.f32.mrb[0].mxu0
        %v1754 = vadd.f32 0.0, %v1753
        %v1755 = vpop.f32.mrb[0].mxu0
        %v1756 = vadd.f32 0.0, %v1755
        %v1757 = vpop.f32.mrb[0].mxu0
        %v1758 = vadd.f32 0.0, %v1757
        %1759 = vmatprep.mubr.bf16.mxu0 0
        %1760 = vmatmul.mubr.bf16.gmra.mrb[0].mxu0 %v1689
        %v1761 = vpop.f32.mrb[0].mxu0
        %v1762 = vadd.f32 0.0, %v1761
        %v1763 = vpop.f32.mrb[0].mxu0
        %v1764 = vadd.f32 0.0, %v1763
        %v1765 = vpop.f32.mrb[0].mxu0
        %v1766 = vadd.f32 0.0, %v1765
        %v1767 = vpop.f32.mrb[0].mxu0
        %v1768 = vadd.f32 0.0, %v1767
        %1769 = vmatprep.mubr.bf16.mxu0 0
        %1770 = vmatmul.mubr.bf16.gmra.mrb[0].mxu0 %v1692
        %v1771 = vpop.f32.mrb[0].mxu0
        %v1772 = vadd.f32 0.0, %v1771
        %v1773 = vpop.f32.mrb[0].mxu0
        %v1774 = vadd.f32 0.0, %v1773
        %v1775 = vpop.f32.mrb[0].mxu0
        %v1776 = vadd.f32 0.0, %v1775
        %v1777 = vpop.f32.mrb[0].mxu0
        %v1778 = vadd.f32 0.0, %v1777
        %1779 = vmatprep.mubr.bf16.mxu0 0
        %1780 = vmatmul.mubr.bf16.gmra.mrb[0].mxu0 %v1695
        %v1781 = vpop.f32.mrb[0].mxu0
        %v1782 = vadd.f32 0.0, %v1781
        %v1783 = vpop.f32.mrb[0].mxu0
        %v1784 = vadd.f32 0.0, %v1783
        %v1785 = vpop.f32.mrb[0].mxu0
        %v1786 = vadd.f32 0.0, %v1785
        %v1787 = vpop.f32.mrb[0].mxu0
        %v1788 = vadd.f32 0.0, %v1787
        %1789 = vdwg.mxu0
        %v1790 = vadd.f32 %v1589, %v1732
        %v1791 = vadd.f32 %v1590, %v1734
        %v1792 = vadd.f32 %v1591, %v1736
        %v1793 = vadd.f32 %v1592, %v1738
        %v1794 = vadd.f32 %v1593, %v1742
        %v1795 = vadd.f32 %v1594, %v1744
        %v1796 = vadd.f32 %v1595, %v1746
        %v1797 = vadd.f32 %v1596, %v1748
        %v1798 = vadd.f32 %v1597, %v1752
        %v1799 = vadd.f32 %v1598, %v1754
        %v1800 = vadd.f32 %v1599, %v1756
        %v1801 = vadd.f32 %v1600, %v1758
        %v1802 = vadd.f32 %v1601, %v1762
        %v1803 = vadd.f32 %v1602, %v1764
        %v1804 = vadd.f32 %v1603, %v1766
        %v1805 = vadd.f32 %v1604, %v1768
        %v1806 = vadd.f32 %v1605, %v1772
        %v1807 = vadd.f32 %v1606, %v1774
        %v1808 = vadd.f32 %v1607, %v1776
        %v1809 = vadd.f32 %v1608, %v1778
        %v1810 = vadd.f32 %v1609, %v1782
        %v1811 = vadd.f32 %v1610, %v1784
        %v1812 = vadd.f32 %v1611, %v1786
        %v1813 = vadd.f32 %v1612, %v1788
        %v1814 = vld [vmem:[#allocation2 + $0x18] sm:$0xf]
        %v1815 = vld [vmem:[#allocation2 + $0x1c] sm:$0xf]
        %v1816 = vld [vmem:[#allocation2 + $0x20] sm:$0xf]
        %v1817 = vld [vmem:[#allocation2 + $0x24] sm:$0xf]
        %v1818 = vld [vmem:[#allocation2 + $0x28] sm:$0xf]
        %v1819 = vld [vmem:[#allocation2 + $0x2c] sm:$0xf]
        %v1820 = vld [vmem:[#allocation2 + $0x30] sm:$0xf]
        %v1821 = vld [vmem:[#allocation2 + $0x34] sm:$0xf]
        %v1822 = vld [vmem:[#allocation2 + $0x38] sm:$0xf]
        %v1823 = vld [vmem:[#allocation2 + $0x3c] sm:$0xf]
        %v1824 = vld [vmem:[#allocation2 + $0x40] sm:$0xf]
        %v1825 = vld [vmem:[#allocation2 + $0x44] sm:$0xf]
        %s1826 = scalar_lea.vmem %s328, 384 [#allocation3]
        %v1827 = vld [vmem:[%s1826] sm:$0xff]
        %v1828 = vld [vmem:[%s1826 + $0x8] sm:$0xff]
        %v1829 = vld [vmem:[%s1826 + $0x10] sm:$0xff]
        %v1830 = vld [vmem:[%s1826 + $0x18] sm:$0xff]
        %v1831 = vld [vmem:[%s1826 + $0x20] sm:$0xff]
        %v1832 = vld [vmem:[%s1826 + $0x28] sm:$0xff]
        %v1833 = vld [vmem:[%s1826 + $0x30] sm:$0xff]
        %v1834 = vld [vmem:[%s1826 + $0x38] sm:$0xff]
        %v1847 = vunpack.c.l.b16 %v1814
        %v1848 = vunpack.c.l.b16 %v1815
        %v1849 = vunpack.c.l.b16 %v1816
        %v1850 = vunpack.c.l.b16 %v1817
        %v1851 = vunpack.c.l.b16 %v1818
        %v1852 = vunpack.c.l.b16 %v1819
        %v1853 = vunpack.c.l.b16 %v1820
        %v1854 = vunpack.c.l.b16 %v1821
        %v1855 = vunpack.c.l.b16 %v1822
        %v1856 = vunpack.c.l.b16 %v1823
        %v1857 = vunpack.c.l.b16 %v1824
        %v1858 = vunpack.c.l.b16 %v1825
        %v1859 = vpack.c.b16 %v1848, %v1847
        %v1860 = vpack.c.b16 %v1850, %v1849
        %v1861 = vpack.c.b16 %v1852, %v1851
        %v1862 = vpack.c.b16 %v1854, %v1853
        %v1863 = vpack.c.b16 %v1856, %v1855
        %v1864 = vpack.c.b16 %v1858, %v1857
        %v1873 = vunpack.c.l.b16 %v1827
        %v1874 = vunpack.c.h.b16 %v1827
        %v1875 = vunpack.c.l.b16 %v1828
        %v1876 = vunpack.c.h.b16 %v1828
        %v1877 = vunpack.c.l.b16 %v1829
        %v1878 = vunpack.c.h.b16 %v1829
        %v1879 = vunpack.c.l.b16 %v1830
        %v1880 = vunpack.c.h.b16 %v1830
        %v1881 = vunpack.c.l.b16 %v1831
        %v1882 = vunpack.c.h.b16 %v1831
        %v1883 = vunpack.c.l.b16 %v1832
        %v1884 = vunpack.c.h.b16 %v1832
        %v1885 = vunpack.c.l.b16 %v1833
        %v1886 = vunpack.c.h.b16 %v1833
        %v1887 = vunpack.c.l.b16 %v1834
        %v1888 = vunpack.c.h.b16 %v1834
        %v1889 = vpack.c.b16 %v1875, %v1873
        %v1890 = vpack.c.b16 %v1876, %v1874
        %v1891 = vpack.c.b16 %v1879, %v1877
        %v1892 = vpack.c.b16 %v1880, %v1878
        %v1893 = vpack.c.b16 %v1883, %v1881
        %v1894 = vpack.c.b16 %v1884, %v1882
        %v1895 = vpack.c.b16 %v1887, %v1885
        %v1896 = vpack.c.b16 %v1888, %v1886
        %v1906 = vsel %vm646, %v1859, 0
        %v1909 = vsel %vm646, %v1860, 0
        %v1912 = vsel %vm646, %v1861, 0
        %v1915 = vsel %vm646, %v1862, 0
        %v1918 = vsel %vm646, %v1863, 0
        %v1921 = vsel %vm646, %v1864, 0
        %1923 = vmatprep.subr.bf16.mxu0 %v1890
        %1924 = vmatpush1.bf16.msra.mxu0 %v1889
        %1925 = vmatprep.subr.bf16.mxu0 %v1892
        %1926 = vmatpush1.bf16.msra.mxu0 %v1891
        %1927 = vmatprep.subr.bf16.mxu0 %v1894
        %1928 = vmatpush1.bf16.msra.mxu0 %v1893
        %1929 = vmatprep.subr.bf16.mxu0 %v1896
        %1930 = vmatpush1.bf16.msra.mxu0 %v1895
        %1931 = vmatprep.subr.bf16.mxu0 0
        %1932 = vmatpush1.bf16.msra.mxu0 0
        %1933 = vmatprep.subr.bf16.mxu0 0
        %1934 = vmatpush1.bf16.msra.mxu0 0
        %1935 = vmatprep.subr.bf16.mxu0 0
        %1936 = vmatpush1.bf16.msra.mxu0 0
        %1937 = vmatprep.subr.bf16.mxu0 0
        %1938 = vmatpush1.bf16.msra.mxu0 0
        %1939 = vmatprep.subr.bf16.mxu0 0
        %1940 = vmatpush1.bf16.msra.mxu0 0
        %1941 = vmatprep.subr.bf16.mxu0 0
        %1942 = vmatpush1.bf16.msra.mxu0 0
        %1943 = vmatprep.subr.bf16.mxu0 0
        %1944 = vmatpush1.bf16.msra.mxu0 0
        %1945 = vmatprep.subr.bf16.mxu0 0
        %1946 = vmatpush1.bf16.msra.mxu0 0
        %1947 = vmatprep.subr.bf16.mxu0 0
        %1948 = vmatpush1.bf16.msra.mxu0 0
        %1949 = vmatprep.subr.bf16.mxu0 0
        %1950 = vmatpush1.bf16.msra.mxu0 0
        %1951 = vmatprep.subr.bf16.mxu0 0
        %1952 = vmatpush1.bf16.msra.mxu0 0
        %1953 = vmatprep.subr.bf16.mxu0 0
        %1954 = vmatpush1.bf16.msra.mxu0 0
        %1955 = vmatprep.mubr.bf16.mxu0 0
        %1956 = vmatmul.mubr.bf16.gmra.mrb[0].mxu0 %v1906
        %v1957 = vpop.f32.mrb[0].mxu0
        %v1958 = vadd.f32 0.0, %v1957
        %v1959 = vpop.f32.mrb[0].mxu0
        %v1960 = vadd.f32 0.0, %v1959
        %v1961 = vpop.f32.mrb[0].mxu0
        %v1962 = vadd.f32 0.0, %v1961
        %v1963 = vpop.f32.mrb[0].mxu0
        %v1964 = vadd.f32 0.0, %v1963
        %1965 = vmatprep.mubr.bf16.mxu0 0
        %1966 = vmatmul.mubr.bf16.gmra.mrb[0].mxu0 %v1909
        %v1967 = vpop.f32.mrb[0].mxu0
        %v1968 = vadd.f32 0.0, %v1967
        %v1969 = vpop.f32.mrb[0].mxu0
        %v1970 = vadd.f32 0.0, %v1969
        %v1971 = vpop.f32.mrb[0].mxu0
        %v1972 = vadd.f32 0.0, %v1971
        %v1973 = vpop.f32.mrb[0].mxu0
        %v1974 = vadd.f32 0.0, %v1973
        %1975 = vmatprep.mubr.bf16.mxu0 0
        %1976 = vmatmul.mubr.bf16.gmra.mrb[0].mxu0 %v1912
        %v1977 = vpop.f32.mrb[0].mxu0
        %v1978 = vadd.f32 0.0, %v1977
        %v1979 = vpop.f32.mrb[0].mxu0
        %v1980 = vadd.f32 0.0, %v1979
        %v1981 = vpop.f32.mrb[0].mxu0
        %v1982 = vadd.f32 0.0, %v1981
        %v1983 = vpop.f32.mrb[0].mxu0
        %v1984 = vadd.f32 0.0, %v1983
        %1985 = vmatprep.mubr.bf16.mxu0 0
        %1986 = vmatmul.mubr.bf16.gmra.mrb[0].mxu0 %v1915
        %v1987 = vpop.f32.mrb[0].mxu0
        %v1988 = vadd.f32 0.0, %v1987
        %v1989 = vpop.f32.mrb[0].mxu0
        %v1990 = vadd.f32 0.0, %v1989
        %v1991 = vpop.f32.mrb[0].mxu0
        %v1992 = vadd.f32 0.0, %v1991
        %v1993 = vpop.f32.mrb[0].mxu0
        %v1994 = vadd.f32 0.0, %v1993
        %1995 = vmatprep.mubr.bf16.mxu0 0
        %1996 = vmatmul.mubr.bf16.gmra.mrb[0].mxu0 %v1918
        %v1997 = vpop.f32.mrb[0].mxu0
        %v1998 = vadd.f32 0.0, %v1997
        %v1999 = vpop.f32.mrb[0].mxu0
        %v2000 = vadd.f32 0.0, %v1999
        %v2001 = vpop.f32.mrb[0].mxu0
        %v2002 = vadd.f32 0.0, %v2001
        %v2003 = vpop.f32.mrb[0].mxu0
        %v2004 = vadd.f32 0.0, %v2003
        %2005 = vmatprep.mubr.bf16.mxu0 0
        %2006 = vmatmul.mubr.bf16.gmra.mrb[0].mxu0 %v1921
        %v2007 = vpop.f32.mrb[0].mxu0
        %v2008 = vadd.f32 0.0, %v2007
        %v2009 = vpop.f32.mrb[0].mxu0
        %v2010 = vadd.f32 0.0, %v2009
        %v2011 = vpop.f32.mrb[0].mxu0
        %v2012 = vadd.f32 0.0, %v2011
        %v2013 = vpop.f32.mrb[0].mxu0
        %v2014 = vadd.f32 0.0, %v2013
        %2015 = vdwg.mxu0
        %v2016 = vadd.f32 %v1790, %v1958
        %v2017 = vadd.f32 %v1791, %v1960
        %v2018 = vadd.f32 %v1792, %v1962
        %v2019 = vadd.f32 %v1793, %v1964
        %v2020 = vadd.f32 %v1794, %v1968
        %v2021 = vadd.f32 %v1795, %v1970
        %v2022 = vadd.f32 %v1796, %v1972
        %v2023 = vadd.f32 %v1797, %v1974
        %v2024 = vadd.f32 %v1798, %v1978
        %v2025 = vadd.f32 %v1799, %v1980
        %v2026 = vadd.f32 %v1800, %v1982
        %v2027 = vadd.f32 %v1801, %v1984
        %v2028 = vadd.f32 %v1802, %v1988
        %v2029 = vadd.f32 %v1803, %v1990
        %v2030 = vadd.f32 %v1804, %v1992
        %v2031 = vadd.f32 %v1805, %v1994
        %v2032 = vadd.f32 %v1806, %v1998
        %v2033 = vadd.f32 %v1807, %v2000
        %v2034 = vadd.f32 %v1808, %v2002
        %v2035 = vadd.f32 %v1809, %v2004
        %v2036 = vadd.f32 %v1810, %v2008
        %v2037 = vadd.f32 %v1811, %v2010
        %v2038 = vadd.f32 %v1812, %v2012
        %v2039 = vadd.f32 %v1813, %v2014
        %v2040 = vld [vmem:[#allocation2 + $0x18] sm:$0xf]
        %v2041 = vld [vmem:[#allocation2 + $0x1c] sm:$0xf]
        %v2042 = vld [vmem:[#allocation2 + $0x20] sm:$0xf]
        %v2043 = vld [vmem:[#allocation2 + $0x24] sm:$0xf]
        %v2044 = vld [vmem:[#allocation2 + $0x28] sm:$0xf]
        %v2045 = vld [vmem:[#allocation2 + $0x2c] sm:$0xf]
        %v2046 = vld [vmem:[#allocation2 + $0x30] sm:$0xf]
        %v2047 = vld [vmem:[#allocation2 + $0x34] sm:$0xf]
        %v2048 = vld [vmem:[#allocation2 + $0x38] sm:$0xf]
        %v2049 = vld [vmem:[#allocation2 + $0x3c] sm:$0xf]
        %v2050 = vld [vmem:[#allocation2 + $0x40] sm:$0xf]
        %v2051 = vld [vmem:[#allocation2 + $0x44] sm:$0xf]
        %v2052 = vld [vmem:[#allocation2 + $0x48] sm:$0x1]
        %s2053 = scalar_lea.vmem %s328, 448 [#allocation3]
        %v2054 = vld [vmem:[%s2053] sm:$0xff]
        %v2055 = vld [vmem:[%s2053 + $0x8] sm:$0xff]
        %v2056 = vld [vmem:[%s2053 + $0x10] sm:$0xff]
        %v2057 = vld [vmem:[%s2053 + $0x18] sm:$0xff]
        %v2058 = vld [vmem:[%s2053 + $0x20] sm:$0xff]
        %v2059 = vld [vmem:[%s2053 + $0x28] sm:$0xff]
        %v2060 = vld [vmem:[%s2053 + $0x30] sm:$0xff]
        %v2061 = vld [vmem:[%s2053 + $0x38] sm:$0xff]
        %v2075 = vunpack.c.l.b16 %v2040
        %v2076 = vunpack.c.l.b16 %v2041
        %v2077 = vunpack.c.l.b16 %v2042
        %v2078 = vunpack.c.l.b16 %v2043
        %v2079 = vunpack.c.l.b16 %v2044
        %v2080 = vunpack.c.l.b16 %v2045
        %v2081 = vunpack.c.l.b16 %v2046
        %v2082 = vunpack.c.l.b16 %v2047
        %v2083 = vunpack.c.l.b16 %v2048
        %v2084 = vunpack.c.l.b16 %v2049
        %v2085 = vunpack.c.l.b16 %v2050
        %v2086 = vunpack.c.l.b16 %v2051
        %v2087 = vunpack.c.l.b16 %v2052
        %v2088 = vpack.c.b16 %v2076, %v2075
        %v2089 = vpack.c.b16 %v2078, %v2077
        %v2090 = vpack.c.b16 %v2080, %v2079
        %v2091 = vpack.c.b16 %v2082, %v2081
        %v2092 = vpack.c.b16 %v2084, %v2083
        %v2093 = vpack.c.b16 %v2086, %v2085
        %v2094 = vpack.c.b16 %v2087, %v2087
        %v2096 = vshrl.u32 %v2088, 16
        %v2098 = vshll.u32 %v2088, 16
        %v2100 = vrot.slane %v2098, 1
        %v2101 = vor.u32 %v2096, %v2100
        %v2103 = vshll.u32 %v2089, 16
        %v2105 = vrot.slane %v2103, 1
        %v2106 = vsel %vm553, %v2101, %v2105
        %v2107 = vshrl.u32 %v2089, 16
        %v2109 = vor.u32 %v2107, %v2105
        %v2111 = vshll.u32 %v2090, 16
        %v2113 = vrot.slane %v2111, 1
        %v2114 = vsel %vm553, %v2109, %v2113
        %v2115 = vshrl.u32 %v2090, 16
        %v2117 = vor.u32 %v2115, %v2113
        %v2119 = vshll.u32 %v2091, 16
        %v2121 = vrot.slane %v2119, 1
        %v2122 = vsel %vm553, %v2117, %v2121
        %v2123 = vshrl.u32 %v2091, 16
        %v2125 = vor.u32 %v2123, %v2121
        %v2127 = vshll.u32 %v2092, 16
        %v2129 = vrot.slane %v2127, 1
        %v2130 = vsel %vm553, %v2125, %v2129
        %v2131 = vshrl.u32 %v2092, 16
        %v2133 = vor.u32 %v2131, %v2129
        %v2135 = vshll.u32 %v2093, 16
        %v2137 = vrot.slane %v2135, 1
        %v2138 = vsel %vm553, %v2133, %v2137
        %v2139 = vshrl.u32 %v2093, 16
        %v2141 = vor.u32 %v2139, %v2137
        %v2143 = vshll.u32 %v2094, 16
        %v2145 = vrot.slane %v2143, 1
        %v2146 = vsel %vm553, %v2141, %v2145
        %v2155 = vunpack.c.l.b16 %v2054
        %v2156 = vunpack.c.h.b16 %v2054
        %v2157 = vunpack.c.l.b16 %v2055
        %v2158 = vunpack.c.h.b16 %v2055
        %v2159 = vunpack.c.l.b16 %v2056
        %v2160 = vunpack.c.h.b16 %v2056
        %v2161 = vunpack.c.l.b16 %v2057
        %v2162 = vunpack.c.h.b16 %v2057
        %v2163 = vunpack.c.l.b16 %v2058
        %v2164 = vunpack.c.h.b16 %v2058
        %v2165 = vunpack.c.l.b16 %v2059
        %v2166 = vunpack.c.h.b16 %v2059
        %v2167 = vunpack.c.l.b16 %v2060
        %v2168 = vunpack.c.h.b16 %v2060
        %v2169 = vunpack.c.l.b16 %v2061
        %v2170 = vunpack.c.h.b16 %v2061
        %v2171 = vpack.c.b16 %v2157, %v2155
        %v2172 = vpack.c.b16 %v2158, %v2156
        %v2173 = vpack.c.b16 %v2161, %v2159
        %v2174 = vpack.c.b16 %v2162, %v2160
        %v2175 = vpack.c.b16 %v2165, %v2163
        %v2176 = vpack.c.b16 %v2166, %v2164
        %v2177 = vpack.c.b16 %v2169, %v2167
        %v2178 = vpack.c.b16 %v2170, %v2168
        %v2188 = vsel %vm646, %v2106, 0
        %v2191 = vsel %vm646, %v2114, 0
        %v2194 = vsel %vm646, %v2122, 0
        %v2197 = vsel %vm646, %v2130, 0
        %v2200 = vsel %vm646, %v2138, 0
        %v2203 = vsel %vm646, %v2146, 0
        %2205 = vmatprep.subr.bf16.mxu0 %v2172
        %2206 = vmatpush1.bf16.msra.mxu0 %v2171
        %2207 = vmatprep.subr.bf16.mxu0 %v2174
        %2208 = vmatpush1.bf16.msra.mxu0 %v2173
        %2209 = vmatprep.subr.bf16.mxu0 %v2176
        %2210 = vmatpush1.bf16.msra.mxu0 %v2175
        %2211 = vmatprep.subr.bf16.mxu0 %v2178
        %2212 = vmatpush1.bf16.msra.mxu0 %v2177
        %2213 = vmatprep.subr.bf16.mxu0 0
        %2214 = vmatpush1.bf16.msra.mxu0 0
        %2215 = vmatprep.subr.bf16.mxu0 0
        %2216 = vmatpush1.bf16.msra.mxu0 0
        %2217 = vmatprep.subr.bf16.mxu0 0
        %2218 = vmatpush1.bf16.msra.mxu0 0
        %2219 = vmatprep.subr.bf16.mxu0 0
        %2220 = vmatpush1.bf16.msra.mxu0 0
        %2221 = vmatprep.subr.bf16.mxu0 0
        %2222 = vmatpush1.bf16.msra.mxu0 0
        %2223 = vmatprep.subr.bf16.mxu0 0
        %2224 = vmatpush1.bf16.msra.mxu0 0
        %2225 = vmatprep.subr.bf16.mxu0 0
        %2226 = vmatpush1.bf16.msra.mxu0 0
        %2227 = vmatprep.subr.bf16.mxu0 0
        %2228 = vmatpush1.bf16.msra.mxu0 0
        %2229 = vmatprep.subr.bf16.mxu0 0
        %2230 = vmatpush1.bf16.msra.mxu0 0
        %2231 = vmatprep.subr.bf16.mxu0 0
        %2232 = vmatpush1.bf16.msra.mxu0 0
        %2233 = vmatprep.subr.bf16.mxu0 0
        %2234 = vmatpush1.bf16.msra.mxu0 0
        %2235 = vmatprep.subr.bf16.mxu0 0
        %2236 = vmatpush1.bf16.msra.mxu0 0
        %2237 = vmatprep.mubr.bf16.mxu0 0
        %2238 = vmatmul.mubr.bf16.gmra.mrb[0].mxu0 %v2188
        %v2239 = vpop.f32.mrb[0].mxu0
        %v2240 = vadd.f32 0.0, %v2239
        %v2241 = vpop.f32.mrb[0].mxu0
        %v2242 = vadd.f32 0.0, %v2241
        %v2243 = vpop.f32.mrb[0].mxu0
        %v2244 = vadd.f32 0.0, %v2243
        %v2245 = vpop.f32.mrb[0].mxu0
        %v2246 = vadd.f32 0.0, %v2245
        %2247 = vmatprep.mubr.bf16.mxu0 0
        %2248 = vmatmul.mubr.bf16.gmra.mrb[0].mxu0 %v2191
        %v2249 = vpop.f32.mrb[0].mxu0
        %v2250 = vadd.f32 0.0, %v2249
        %v2251 = vpop.f32.mrb[0].mxu0
        %v2252 = vadd.f32 0.0, %v2251
        %v2253 = vpop.f32.mrb[0].mxu0
        %v2254 = vadd.f32 0.0, %v2253
        %v2255 = vpop.f32.mrb[0].mxu0
        %v2256 = vadd.f32 0.0, %v2255
        %2257 = vmatprep.mubr.bf16.mxu0 0
        %2258 = vmatmul.mubr.bf16.gmra.mrb[0].mxu0 %v2194
        %v2259 = vpop.f32.mrb[0].mxu0
        %v2260 = vadd.f32 0.0, %v2259
        %v2261 = vpop.f32.mrb[0].mxu0
        %v2262 = vadd.f32 0.0, %v2261
        %v2263 = vpop.f32.mrb[0].mxu0
        %v2264 = vadd.f32 0.0, %v2263
        %v2265 = vpop.f32.mrb[0].mxu0
        %v2266 = vadd.f32 0.0, %v2265
        %2267 = vmatprep.mubr.bf16.mxu0 0
        %2268 = vmatmul.mubr.bf16.gmra.mrb[0].mxu0 %v2197
        %v2269 = vpop.f32.mrb[0].mxu0
        %v2270 = vadd.f32 0.0, %v2269
        %v2271 = vpop.f32.mrb[0].mxu0
        %v2272 = vadd.f32 0.0, %v2271
        %v2273 = vpop.f32.mrb[0].mxu0
        %v2274 = vadd.f32 0.0, %v2273
        %v2275 = vpop.f32.mrb[0].mxu0
        %v2276 = vadd.f32 0.0, %v2275
        %2277 = vmatprep.mubr.bf16.mxu0 0
        %2278 = vmatmul.mubr.bf16.gmra.mrb[0].mxu0 %v2200
        %v2279 = vpop.f32.mrb[0].mxu0
        %v2280 = vadd.f32 0.0, %v2279
        %v2281 = vpop.f32.mrb[0].mxu0
        %v2282 = vadd.f32 0.0, %v2281
        %v2283 = vpop.f32.mrb[0].mxu0
        %v2284 = vadd.f32 0.0, %v2283
        %v2285 = vpop.f32.mrb[0].mxu0
        %v2286 = vadd.f32 0.0, %v2285
        %2287 = vmatprep.mubr.bf16.mxu0 0
        %2288 = vmatmul.mubr.bf16.gmra.mrb[0].mxu0 %v2203
        %v2289 = vpop.f32.mrb[0].mxu0
        %v2290 = vadd.f32 0.0, %v2289
        %v2291 = vpop.f32.mrb[0].mxu0
        %v2292 = vadd.f32 0.0, %v2291
        %v2293 = vpop.f32.mrb[0].mxu0
        %v2294 = vadd.f32 0.0, %v2293
        %v2295 = vpop.f32.mrb[0].mxu0
        %v2296 = vadd.f32 0.0, %v2295
        %2297 = vdwg.mxu0
        %v2298 = vadd.f32 %v2016, %v2240
        %v2299 = vadd.f32 %v2017, %v2242
        %v2300 = vadd.f32 %v2018, %v2244
        %v2301 = vadd.f32 %v2019, %v2246
        %v2302 = vadd.f32 %v2020, %v2250
        %v2303 = vadd.f32 %v2021, %v2252
        %v2304 = vadd.f32 %v2022, %v2254
        %v2305 = vadd.f32 %v2023, %v2256
        %v2306 = vadd.f32 %v2024, %v2260
        %v2307 = vadd.f32 %v2025, %v2262
        %v2308 = vadd.f32 %v2026, %v2264
        %v2309 = vadd.f32 %v2027, %v2266
        %v2310 = vadd.f32 %v2028, %v2270
        %v2311 = vadd.f32 %v2029, %v2272
        %v2312 = vadd.f32 %v2030, %v2274
        %v2313 = vadd.f32 %v2031, %v2276
        %v2314 = vadd.f32 %v2032, %v2280
        %v2315 = vadd.f32 %v2033, %v2282
        %v2316 = vadd.f32 %v2034, %v2284
        %v2317 = vadd.f32 %v2035, %v2286
        %v2318 = vadd.f32 %v2036, %v2290
        %v2319 = vadd.f32 %v2037, %v2292
        %v2320 = vadd.f32 %v2038, %v2294
        %v2321 = vadd.f32 %v2039, %v2296
        %v2322 = vld [vmem:[#allocation2 + $0x18] sm:$0xe]
        %s2323 = scalar_lea.vmem %s328, 512 [#allocation3]
        %v2324 = vld [vmem:[%s2323] sm:$0xff]
        %v2325 = vld [vmem:[%s2323 + $0x8] sm:$0xff]
        %v2326 = vld [vmem:[%s2323 + $0x10] sm:$0xff]
        %v2327 = vld [vmem:[%s2323 + $0x18] sm:$0xff]
        %v2328 = vld [vmem:[%s2323 + $0x20] sm:$0xff]
        %v2329 = vld [vmem:[%s2323 + $0x28] sm:$0xff]
        %v2330 = vld [vmem:[%s2323 + $0x30] sm:$0xff]
        %v2331 = vld [vmem:[%s2323 + $0x38] sm:$0xff]
        %v2333 = vunpack.c.l.b16 %v2322
        %v2334 = vpack.c.b16 %v2076, %v2333
        %v2335 = vrot.slane %v2334, 1
        %v2336 = vrot.slane %v2089, 1
        %v2337 = vsel %vm916, %v2335, %v2336
        %v2338 = vrot.slane %v2090, 1
        %v2339 = vsel %vm916, %v2336, %v2338
        %v2340 = vrot.slane %v2091, 1
        %v2341 = vsel %vm916, %v2338, %v2340
        %v2342 = vrot.slane %v2092, 1
        %v2343 = vsel %vm916, %v2340, %v2342
        %v2344 = vrot.slane %v2093, 1
        %v2345 = vsel %vm916, %v2342, %v2344
        %v2346 = vrot.slane %v2094, 1
        %v2347 = vsel %vm916, %v2344, %v2346
        %v2356 = vunpack.c.l.b16 %v2324
        %v2357 = vunpack.c.h.b16 %v2324
        %v2358 = vunpack.c.l.b16 %v2325
        %v2359 = vunpack.c.h.b16 %v2325
        %v2360 = vunpack.c.l.b16 %v2326
        %v2361 = vunpack.c.h.b16 %v2326
        %v2362 = vunpack.c.l.b16 %v2327
        %v2363 = vunpack.c.h.b16 %v2327
        %v2364 = vunpack.c.l.b16 %v2328
        %v2365 = vunpack.c.h.b16 %v2328
        %v2366 = vunpack.c.l.b16 %v2329
        %v2367 = vunpack.c.h.b16 %v2329
        %v2368 = vunpack.c.l.b16 %v2330
        %v2369 = vunpack.c.h.b16 %v2330
        %v2370 = vunpack.c.l.b16 %v2331
        %v2371 = vunpack.c.h.b16 %v2331
        %v2372 = vpack.c.b16 %v2358, %v2356
        %v2373 = vpack.c.b16 %v2359, %v2357
        %v2374 = vpack.c.b16 %v2362, %v2360
        %v2375 = vpack.c.b16 %v2363, %v2361
        %v2376 = vpack.c.b16 %v2366, %v2364
        %v2377 = vpack.c.b16 %v2367, %v2365
        %v2378 = vpack.c.b16 %v2370, %v2368
        %v2379 = vpack.c.b16 %v2371, %v2369
        %v2389 = vsel %vm646, %v2337, 0
        %v2392 = vsel %vm646, %v2339, 0
        %v2395 = vsel %vm646, %v2341, 0
        %v2398 = vsel %vm646, %v2343, 0
        %v2401 = vsel %vm646, %v2345, 0
        %v2404 = vsel %vm646, %v2347, 0
        %2406 = vmatprep.subr.bf16.mxu0 %v2373
        %2407 = vmatpush1.bf16.msra.mxu0 %v2372
        %2408 = vmatprep.subr.bf16.mxu0 %v2375
        %2409 = vmatpush1.bf16.msra.mxu0 %v2374
        %2410 = vmatprep.subr.bf16.mxu0 %v2377
        %2411 = vmatpush1.bf16.msra.mxu0 %v2376
        %2412 = vmatprep.subr.bf16.mxu0 %v2379
        %2413 = vmatpush1.bf16.msra.mxu0 %v2378
        %2414 = vmatprep.subr.bf16.mxu0 0
        %2415 = vmatpush1.bf16.msra.mxu0 0
        %2416 = vmatprep.subr.bf16.mxu0 0
        %2417 = vmatpush1.bf16.msra.mxu0 0
        %2418 = vmatprep.subr.bf16.mxu0 0
        %2419 = vmatpush1.bf16.msra.mxu0 0
        %2420 = vmatprep.subr.bf16.mxu0 0
        %2421 = vmatpush1.bf16.msra.mxu0 0
        %2422 = vmatprep.subr.bf16.mxu0 0
        %2423 = vmatpush1.bf16.msra.mxu0 0
        %2424 = vmatprep.subr.bf16.mxu0 0
        %2425 = vmatpush1.bf16.msra.mxu0 0
        %2426 = vmatprep.subr.bf16.mxu0 0
        %2427 = vmatpush1.bf16.msra.mxu0 0
        %2428 = vmatprep.subr.bf16.mxu0 0
        %2429 = vmatpush1.bf16.msra.mxu0 0
        %2430 = vmatprep.subr.bf16.mxu0 0
        %2431 = vmatpush1.bf16.msra.mxu0 0
        %2432 = vmatprep.subr.bf16.mxu0 0
        %2433 = vmatpush1.bf16.msra.mxu0 0
        %2434 = vmatprep.subr.bf16.mxu0 0
        %2435 = vmatpush1.bf16.msra.mxu0 0
        %2436 = vmatprep.subr.bf16.mxu0 0
        %2437 = vmatpush1.bf16.msra.mxu0 0
        %2438 = vmatprep.mubr.bf16.mxu0 0
        %2439 = vmatmul.mubr.bf16.gmra.mrb[0].mxu0 %v2389
        %v2440 = vpop.f32.mrb[0].mxu0
        %v2441 = vadd.f32 0.0, %v2440
        %v2442 = vpop.f32.mrb[0].mxu0
        %v2443 = vadd.f32 0.0, %v2442
        %v2444 = vpop.f32.mrb[0].mxu0
        %v2445 = vadd.f32 0.0, %v2444
        %v2446 = vpop.f32.mrb[0].mxu0
        %v2447 = vadd.f32 0.0, %v2446
        %2448 = vmatprep.mubr.bf16.mxu0 0
        %2449 = vmatmul.mubr.bf16.gmra.mrb[0].mxu0 %v2392
        %v2450 = vpop.f32.mrb[0].mxu0
        %v2451 = vadd.f32 0.0, %v2450
        %v2452 = vpop.f32.mrb[0].mxu0
        %v2453 = vadd.f32 0.0, %v2452
        %v2454 = vpop.f32.mrb[0].mxu0
        %v2455 = vadd.f32 0.0, %v2454
        %v2456 = vpop.f32.mrb[0].mxu0
        %v2457 = vadd.f32 0.0, %v2456
        %2458 = vmatprep.mubr.bf16.mxu0 0
        %2459 = vmatmul.mubr.bf16.gmra.mrb[0].mxu0 %v2395
        %v2460 = vpop.f32.mrb[0].mxu0
        %v2461 = vadd.f32 0.0, %v2460
        %v2462 = vpop.f32.mrb[0].mxu0
        %v2463 = vadd.f32 0.0, %v2462
        %v2464 = vpop.f32.mrb[0].mxu0
        %v2465 = vadd.f32 0.0, %v2464
        %v2466 = vpop.f32.mrb[0].mxu0
        %v2467 = vadd.f32 0.0, %v2466
        %2468 = vmatprep.mubr.bf16.mxu0 0
        %2469 = vmatmul.mubr.bf16.gmra.mrb[0].mxu0 %v2398
        %v2470 = vpop.f32.mrb[0].mxu0
        %v2471 = vadd.f32 0.0, %v2470
        %v2472 = vpop.f32.mrb[0].mxu0
        %v2473 = vadd.f32 0.0, %v2472
        %v2474 = vpop.f32.mrb[0].mxu0
        %v2475 = vadd.f32 0.0, %v2474
        %v2476 = vpop.f32.mrb[0].mxu0
        %v2477 = vadd.f32 0.0, %v2476
        %2478 = vmatprep.mubr.bf16.mxu0 0
        %2479 = vmatmul.mubr.bf16.gmra.mrb[0].mxu0 %v2401
        %v2480 = vpop.f32.mrb[0].mxu0
        %v2481 = vadd.f32 0.0, %v2480
        %v2482 = vpop.f32.mrb[0].mxu0
        %v2483 = vadd.f32 0.0, %v2482
        %v2484 = vpop.f32.mrb[0].mxu0
        %v2485 = vadd.f32 0.0, %v2484
        %v2486 = vpop.f32.mrb[0].mxu0
        %v2487 = vadd.f32 0.0, %v2486
        %2488 = vmatprep.mubr.bf16.mxu0 0
        %2489 = vmatmul.mubr.bf16.gmra.mrb[0].mxu0 %v2404
        %v2490 = vpop.f32.mrb[0].mxu0
        %v2491 = vadd.f32 0.0, %v2490
        %v2492 = vpop.f32.mrb[0].mxu0
        %v2493 = vadd.f32 0.0, %v2492
        %v2494 = vpop.f32.mrb[0].mxu0
        %v2495 = vadd.f32 0.0, %v2494
        %v2496 = vpop.f32.mrb[0].mxu0
        %v2497 = vadd.f32 0.0, %v2496
        %2498 = vdwg.mxu0
        %v2499 = vadd.f32 %v2298, %v2441
        %v2500 = vadd.f32 %v2299, %v2443
        %v2501 = vadd.f32 %v2300, %v2445
        %v2502 = vadd.f32 %v2301, %v2447
        %v2503 = vadd.f32 %v2302, %v2451
        %v2504 = vadd.f32 %v2303, %v2453
        %v2505 = vadd.f32 %v2304, %v2455
        %v2506 = vadd.f32 %v2305, %v2457
        %v2507 = vadd.f32 %v2306, %v2461
        %v2508 = vadd.f32 %v2307, %v2463
        %v2509 = vadd.f32 %v2308, %v2465
        %v2510 = vadd.f32 %v2309, %v2467
        %v2511 = vadd.f32 %v2310, %v2471
        %v2512 = vadd.f32 %v2311, %v2473
        %v2513 = vadd.f32 %v2312, %v2475
        %v2514 = vadd.f32 %v2313, %v2477
        %v2515 = vadd.f32 %v2314, %v2481
        %v2516 = vadd.f32 %v2315, %v2483
        %v2517 = vadd.f32 %v2316, %v2485
        %v2518 = vadd.f32 %v2317, %v2487
        %v2519 = vadd.f32 %v2318, %v2491
        %v2520 = vadd.f32 %v2319, %v2493
        %v2521 = vadd.f32 %v2320, %v2495
        %v2522 = vadd.f32 %v2321, %v2497
        %v2523 = vld [vmem:[%s447] sm:$0x3]
        %v2525 = vlaneseq
        %v2526 = vshrl.u32 %v2525, 7
        %v2527 = vsub.s32 0, %v2526
        %v2528 = vrot.slane %v2523, %v2527
        %v2529 = vlaneseq
        %v2530 = vshrl.u32 %v2529, 7
        %v2531 = vsub.s32 1, %v2530
        %v2532 = vrot.slane %v2523, %v2531
        %v2535 = vadd.f32 %v2499, %v2528
        %v2536 = vadd.f32 %v2500, %v2532
        %v2537 = vadd.f32 %v2501, %v2528
        %v2538 = vadd.f32 %v2502, %v2532
        %v2539 = vadd.f32 %v2503, %v2528
        %v2540 = vadd.f32 %v2504, %v2532
        %v2541 = vadd.f32 %v2505, %v2528
        %v2542 = vadd.f32 %v2506, %v2532
        %v2543 = vadd.f32 %v2507, %v2528
        %v2544 = vadd.f32 %v2508, %v2532
        %v2545 = vadd.f32 %v2509, %v2528
        %v2546 = vadd.f32 %v2510, %v2532
        %v2547 = vadd.f32 %v2511, %v2528
        %v2548 = vadd.f32 %v2512, %v2532
        %v2549 = vadd.f32 %v2513, %v2528
        %v2550 = vadd.f32 %v2514, %v2532
        %v2551 = vadd.f32 %v2515, %v2528
        %v2552 = vadd.f32 %v2516, %v2532
        %v2553 = vadd.f32 %v2517, %v2528
        %v2554 = vadd.f32 %v2518, %v2532
        %v2555 = vadd.f32 %v2519, %v2528
        %v2556 = vadd.f32 %v2520, %v2532
        %v2557 = vadd.f32 %v2521, %v2528
        %v2558 = vadd.f32 %v2522, %v2532
        %v2559 = vmax.f32 %v2535, 0.0
        %v2560 = vmax.f32 %v2536, 0.0
        %v2561 = vmax.f32 %v2537, 0.0
        %v2562 = vmax.f32 %v2538, 0.0
        %v2563 = vmax.f32 %v2539, 0.0
        %v2564 = vmax.f32 %v2540, 0.0
        %v2565 = vmax.f32 %v2541, 0.0
        %v2566 = vmax.f32 %v2542, 0.0
        %v2567 = vmax.f32 %v2543, 0.0
        %v2568 = vmax.f32 %v2544, 0.0
        %v2569 = vmax.f32 %v2545, 0.0
        %v2570 = vmax.f32 %v2546, 0.0
        %v2571 = vmax.f32 %v2547, 0.0
        %v2572 = vmax.f32 %v2548, 0.0
        %v2573 = vmax.f32 %v2549, 0.0
        %v2574 = vmax.f32 %v2550, 0.0
        %v2575 = vmax.f32 %v2551, 0.0
        %v2576 = vmax.f32 %v2552, 0.0
        %v2577 = vmax.f32 %v2553, 0.0
        %v2578 = vmax.f32 %v2554, 0.0
        %v2579 = vmax.f32 %v2555, 0.0
        %v2580 = vmax.f32 %v2556, 0.0
        %v2581 = vmax.f32 %v2557, 0.0
        %v2582 = vmax.f32 %v2558, 0.0
        %v2583 = vpack.c.bf16 %v2561, %v2559
        %v2584 = vpack.c.bf16 %v2562, %v2560
        %v2585 = vpack.c.bf16 %v2565, %v2563
        %v2586 = vpack.c.bf16 %v2566, %v2564
        %v2587 = vpack.c.bf16 %v2569, %v2567
        %v2588 = vpack.c.bf16 %v2570, %v2568
        %v2589 = vpack.c.bf16 %v2573, %v2571
        %v2590 = vpack.c.bf16 %v2574, %v2572
        %v2591 = vpack.c.bf16 %v2577, %v2575
        %v2592 = vpack.c.bf16 %v2578, %v2576
        %v2593 = vpack.c.bf16 %v2581, %v2579
        %v2594 = vpack.c.bf16 %v2582, %v2580
        %v2607 = vunpack.c.l.b16 %v2583
        %v2608 = vunpack.c.l.b16 %v2584
        %v2609 = vunpack.c.h.b16 %v2583
        %v2610 = vunpack.c.h.b16 %v2584
        %v2611 = vunpack.c.l.b16 %v2585
        %v2612 = vunpack.c.l.b16 %v2586
        %v2613 = vunpack.c.h.b16 %v2585
        %v2614 = vunpack.c.h.b16 %v2586
        %v2615 = vunpack.c.l.b16 %v2587
        %v2616 = vunpack.c.l.b16 %v2588
        %v2617 = vunpack.c.h.b16 %v2587
        %v2618 = vunpack.c.h.b16 %v2588
        %v2619 = vunpack.c.l.b16 %v2589
        %v2620 = vunpack.c.l.b16 %v2590
        %v2621 = vunpack.c.h.b16 %v2589
        %v2622 = vunpack.c.h.b16 %v2590
        %v2623 = vunpack.c.l.b16 %v2591
        %v2624 = vunpack.c.l.b16 %v2592
        %v2625 = vunpack.c.h.b16 %v2591
        %v2626 = vunpack.c.h.b16 %v2592
        %v2627 = vunpack.c.l.b16 %v2593
        %v2628 = vunpack.c.l.b16 %v2594
        %v2629 = vunpack.c.h.b16 %v2593
        %v2630 = vunpack.c.h.b16 %v2594
        %v2631 = vpack.c.b16 %v2608, %v2607
        %v2632 = vpack.c.b16 %v2610, %v2609
        %v2633 = vpack.c.b16 %v2612, %v2611
        %v2634 = vpack.c.b16 %v2614, %v2613
        %v2635 = vpack.c.b16 %v2616, %v2615
        %v2636 = vpack.c.b16 %v2618, %v2617
        %v2637 = vpack.c.b16 %v2620, %v2619
        %v2638 = vpack.c.b16 %v2622, %v2621
        %v2639 = vpack.c.b16 %v2624, %v2623
        %v2640 = vpack.c.b16 %v2626, %v2625
        %v2641 = vpack.c.b16 %v2628, %v2627
        %v2642 = vpack.c.b16 %v2630, %v2629
        %2655 = vst [vmem:[%s394] sm:$0xff] %v2631
        %2656 = vst [vmem:[%s394 + $0x8] sm:$0xff] %v2632
        %2657 = vst [vmem:[%s394 + $0x10] sm:$0xff] %v2633
        %2658 = vst [vmem:[%s394 + $0x18] sm:$0xff] %v2634
        %2659 = vst [vmem:[%s394 + $0x20] sm:$0xff] %v2635
        %2660 = vst [vmem:[%s394 + $0x28] sm:$0xff] %v2636
        %2661 = vst [vmem:[%s394 + $0x30] sm:$0xff] %v2637
        %2662 = vst [vmem:[%s394 + $0x38] sm:$0xff] %v2638
        %2663 = vst [vmem:[%s394 + $0x40] sm:$0xff] %v2639
        %2664 = vst [vmem:[%s394 + $0x48] sm:$0xff] %v2640
        %2665 = vst [vmem:[%s394 + $0x50] sm:$0xff] %v2641
        %2666 = vst [vmem:[%s394 + $0x58] sm:$0xff] %v2642
        %s2667 = sand.u32 %s199, 1
        %s2668 = scalar_lea.sflag [#allocation5], %s2667
        %s2669 = sand.u32 %s199, 1
        %s2670 = smul.addr %s2669, 96
        %s2671 = scalar_lea.vmem [#allocation6], %s2670
        // Predicated region
        $region45: #{tpu_custom_call.1} parent=39 // pred_check
          %p2672 = pneg %p209
        $region46: #{tpu_custom_call.1} parent=39 // pred_check_branch
          %2674 = sbr.rel (%p2672) target = $region48
        $region47: #{tpu_custom_call.1} parent=39 // pred_region
          %s2675 = smul.u32 12, %s29
          %s2676 = smul.u32 2, %s27
          %s2678 = ssub.s32 1536, 1536
          %2679 = vsyncadd %s2668, %s2678
          %s2680 = smul.addr %s2675, 4
          %s2681 = sadd.s32 %s2676, %s2680
          %s2682 = smul.addr %s28, 192
          %s2683 = sadd.s32 %s2681, %s2682
          %s2684 = smul.addr %s2683, 64
          %s2685 = scalar_lea.hbm %s5, %s2684
          %s2686 = sshll.u32 %s2671, 4
          %s2687 = int_to_ptr.vmem [resolvable:$true] %s2686
          %2692 = dma.vmem_to_hbm [thread:$0]  %s2687, 1536, %s2685, %s2668, 128, 256, 8
        $region48: #{tpu_custom_call.1} parent=39 // pred_fallthru
          _
      $region40: #{tpu_custom_call.1} parent=5 // pred_fallthru
        _
      %p2693 = scmp.le.s32.totalorder 2, %s17
      // Predicated region
      $region49: #{tpu_custom_call.1} parent=5 // pred_check
        %p2694 = pneg %p2693
      $region50: #{tpu_custom_call.1} parent=5 // pred_check_branch
        %2696 = sbr.rel (%p2694) target = $region52
      $region51: #{tpu_custom_call.1} parent=5 // pred_region
        %s2697 = ssub.s32 %s17, 2
        // Predicated region
        $region53: #{tpu_custom_call.1} parent=51 // pred_check
          %p2698 = pneg %p215
        $region54: #{tpu_custom_call.1} parent=51 // pred_check_branch
          %2700 = sbr.rel (%p2698) target = $region56
        $region55: #{tpu_custom_call.1} parent=51 // pred_region
          %s2701 = sand.u32 %s200, 1
          %s2702 = scalar_lea.sflag [#allocation5], %s2701
          %s2703 = sand.u32 %s200, 1
          %s2704 = smul.addr %s2703, 96
          %s2705 = scalar_lea.vmem [#allocation6], %s2704
          %2706 = dma.done %s2702, 1536
        $region56: #{tpu_custom_call.1} parent=51 // pred_fallthru
          _
      $region52: #{tpu_custom_call.1} parent=5 // pred_fallthru
        _
    $region6: #{tpu_custom_call.1} parent=1 // loop_footer
      %s21 = sadd.s32 1, %s17
    $region7: #{tpu_custom_call.1} parent=1 // loop_footer_branch
      %16 = sbr.rel target = $region3
    $region8: #{tpu_custom_call.1} parent=1 // loop_exit
      _
    %2707 = vsyncpa [#allocation4], 1
    %s2708 = scalar_lea.sflag [#allocation4], 1
    %2709 = vsyncpa %s2708, 1
    %2710 = vsyncpa [#allocation5], 1
    %s2711 = scalar_lea.sflag [#allocation5], 1
    %2712 = vsyncpa %s2711, 1

</llo_original>
